<compile_context>
chip_gen: v5e
topology: v5e:2x2
jax: 0.10.0
libtpu: 0.0.40
codegen_flags: <defaults>
</compile_context>

<pallas_src>
import math
from functools import partial

import numpy as np
import jax
import jax.numpy as jnp
from jax.experimental import pallas as pl
from jax.experimental.pallas import tpu as pltpu

VMEM = pltpu.MemorySpace.VMEM


# ------------------------------ fused kernel -------------------------------

def _fused_kernel(x_ref, band_ref, nl_ref,
                  dw_ref, db_ref, wffc_ref, wsh_ref, shb_ref, wgb_ref, gbb_ref,
                  fu_ref, st2w_ref, wol_ref, wog_ref, ob_ref,
                  stm_ref, sfm_ref, eb_ref, eft_ref,
                  fre_ref, fim_ref, ire_ref, iim_ref,
                  out_ref, skip_ref, *, C, CH):
    """C = residual_channels; CH = FourierUnit channels (= C // 2).

    Layouts: activations (channels, B*T); band features (2 or NH, B*F);
    spectra (CH, B*F*TT) with lane index b*K + f*TT + t.
    """
    def mm(a, b):
        return jnp.dot(a, b, preferred_element_type=jnp.float32)

    x = x_ref[...]                                        # (C, B*T)

    # diffusion projection + broadcast over time (expansion via const matmul)
    nl = mm(dw_ref[...], nl_ref[...]) + db_ref[...]       # (C, B)
    y = x + mm(nl, eb_ref[...])                           # (C, B*T)

    # FFC k=3 convs (l2l+g2l | l2g | SpectralTransform.conv1) stacked per tap;
    # temporal taps via constant batch-blocked shift matrices (zero edges).
    y_prev = mm(y, stm_ref[0])
    y_next = mm(y, stm_ref[1])
    ffc = (mm(wffc_ref[0], y_prev) + mm(wffc_ref[1], y)
           + mm(wffc_ref[2], y_next))                     # (2C + CH, B*T)
    out_xl = ffc[0:C]                                     # convl2l(y_l)+convg2l(y_g)
    l2g = ffc[C:2 * C]                                    # convl2g(y_l)
    st_pre = ffc[2 * C:2 * C + CH]                        # conv1(y_g)
    st_x = st_pre * jax.nn.sigmoid(st_pre)                # silu

    # BSFT: shared conv (k=3, bias) + silu, then stacked gamma/beta conv (k=3).
    band = band_ref[...]                                  # (2, B*F)
    b_prev = mm(band, sfm_ref[0])
    b_next = mm(band, sfm_ref[1])
    actv = (mm(wsh_ref[0], b_prev) + mm(wsh_ref[1], band)
            + mm(wsh_ref[2], b_next) + shb_ref[...])
    actv = actv * jax.nn.sigmoid(actv)                    # (NH, B*F)
    a_prev = mm(actv, sfm_ref[0])
    a_next = mm(actv, sfm_ref[1])
    gb = (mm(wgb_ref[0], a_prev) + mm(wgb_ref[1], actv)
          + mm(wgb_ref[2], a_next) + gbb_ref[...])        # (4*CH, B*F)
    gamma = mm(gb[0:2 * CH], eft_ref[...])                # (2*CH, B*F*TT)
    beta = mm(gb[2 * CH:4 * CH], eft_ref[...])

    # FourierUnit: STFT (reflect pad + window + rDFT folded into constants).
    spec_re = mm(st_x, fre_ref[...])                      # (CH, B*F*TT)
    spec_im = mm(st_x, fim_ref[...])
    # relu(x * (1 + gamma) + beta), gamma/beta rows de-interleaved [re..,im..]
    mod_re = jnp.maximum(spec_re * (1.0 + gamma[0:CH]) + beta[0:CH], 0.0)
    mod_im = jnp.maximum(spec_im * (1.0 + gamma[CH:2 * CH]) + beta[CH:2 * CH],
                         0.0)
    fu = fu_ref[...]                                      # permuted 1x1 Conv2d
    f2_re = mm(fu[0:CH, 0:CH], mod_re) + mm(fu[0:CH, CH:2 * CH], mod_im)
    f2_im = mm(fu[CH:2 * CH, 0:CH], mod_re) + mm(fu[CH:2 * CH, CH:2 * CH],
                                                 mod_im)
    # iSTFT (irDFT + window + overlap-add + 1/env + crop folded into constants)
    fu_time = mm(f2_re, ire_ref[...]) + mm(f2_im, iim_ref[...])   # (CH, B*T)

    # SpectralTransform conv2 and FFC global output.
    st_out = mm(st2w_ref[...], st_x + fu_time)            # (C, B*T)
    out_xg = l2g + st_out

    # gate/filter chunks, sigmoid*tanh gating, output 1x1 conv, residual/skip.
    h = C // 2
    act_l = jax.nn.sigmoid(out_xl[0:h]) * jnp.tanh(out_xl[h:2 * h])
    act_g = jax.nn.sigmoid(out_xg[0:h]) * jnp.tanh(out_xg[h:2 * h])
    proj = mm(wol_ref[...], act_l) + mm(wog_ref[...], act_g) + ob_ref[...]

    out_ref[...] = (x + proj[0:C]) * (1.0 / math.sqrt(2.0))
    skip_ref[...] = proj[C:2 * C]


# ------------------------------ host wrapper -------------------------------

def residual_block_forward(fused, consts, x, band, noise_level):
    B, C, T = x.shape
    Fb = band.shape[-1]
    CH = C // 2

    # tiny layout prep (1 KB tensors) so the kernel sees lane-major 2-D slabs
    x2 = jnp.transpose(x, (1, 0, 2)).reshape(C, B * T)
    band2 = jnp.transpose(band, (1, 0, 2)).reshape(band.shape[1], B * Fb)
    nlT = jnp.transpose(noise_level, (1, 0))              # (POS, B)

    args = (x2, band2, nlT,
            fused["diff_w"], fused["diff_b"], fused["w_ffc"], fused["w_sh"],
            fused["sh_b"], fused["w_gb"], fused["gb_b"], fused["fu_w"],
            fused["st2_w"], fused["w_out_l"], fused["w_out_g"], fused["out_b"],
            consts["s_t"], consts["s_f"], consts["e_b"], consts["e_ft"],
            consts["f_re"], consts["f_im"], consts["i_re"], consts["i_im"])

    out2, skip2 = pl.pallas_call(
        partial(_fused_kernel, C=C, CH=CH),
        out_shape=(jax.ShapeDtypeStruct((C, B * T), jnp.float32),
                   jax.ShapeDtypeStruct((C, B * T), jnp.float32)),
        in_specs=[pl.BlockSpec(memory_space=VMEM)] * len(args),
        out_specs=(pl.BlockSpec(memory_space=VMEM),
                   pl.BlockSpec(memory_space=VMEM)),
        compiler_params=pltpu.CompilerParams(
            vmem_limit_bytes=16 * 1024 * 1024),
    )(*args)

    out = jnp.transpose(out2.reshape(C, B, T), (1, 0, 2))
    skip = jnp.transpose(skip2.reshape(C, B, T), (1, 0, 2))
    return out, skip


# -------------------- constant matrices (numpy, build once) ----------------

def build_fourier_constants(B, T, n_fft, hop, window):
    """STFT/iSTFT + shift/broadcast constants for the fused kernel."""
    window = np.asarray(window, np.float64)
    pad = n_fft // 2
    Lp = T + 2 * pad
    TT = 1 + (Lp - n_fft) // hop
    Fb = n_fft // 2 + 1
    K = Fb * TT
    scale = 1.0 / math.sqrt(n_fft)

    def reflect(i):
        if i < pad:
            return pad - i
        if i < pad + T:
            return i - pad
        return 2 * (pad + T - 1) - pad - i

    # STFT: x (T,) -> spec (F*TT,)  [reflect pad + frame + window + rDFT/ortho]
    f_re = np.zeros((T, K))
    f_im = np.zeros((T, K))
    for t in range(TT):
        for m in range(n_fft):
            tau = reflect(t * hop + m)
            wm = window[m]
            for f in range(Fb):
                ang = 2.0 * math.pi * f * m / n_fft
                f_re[tau, f * TT + t] += wm * math.cos(ang) * scale
                f_im[tau, f * TT + t] += -wm * math.sin(ang) * scale

    # iSTFT: spec (F*TT,) -> x (T,) [irDFT/ortho + window + OLA + 1/env + crop]
    env = np.zeros(Lp)
    for t in range(TT):
        for m in range(n_fft):
            env[t * hop + m] += window[m] ** 2
    assert np.all(env[pad:pad + T] > 1e-8), "NOLA violated for window/hop"

    i_re = np.zeros((K, T))
    i_im = np.zeros((K, T))
    for t in range(TT):
        for m in range(n_fft):
            i = t * hop + m
            l = i - pad
            if 0 <= l < T:
                wm = window[m] / env[i]
                for f in range(Fb):
                    c = 1.0 if (f == 0 or f == Fb - 1) else 2.0
                    ang = 2.0 * math.pi * f * m / n_fft
                    i_re[f * TT + t, l] += wm * c * math.cos(ang) * scale
                    i_im[f * TT + t, l] += -wm * c * math.sin(ang) * scale

    def blockdiag(M, n):
        r, c = M.shape
        out = np.zeros((n * r, n * c), M.dtype)
        for b in range(n):
            out[b * r:(b + 1) * r, b * c:(b + 1) * c] = M
        return out

    def shift_pair(nblk, L):
        n = nblk * L
        i = np.arange(n)[:, None]
        j = np.arange(n)[None, :]
        prev = ((i == j - 1) & (j % L != 0)).astype(np.float64)
        nxt = ((i == j + 1) & (j % L != L - 1)).astype(np.float64)
        return np.stack([prev, nxt], axis=0)

    e_b = (np.arange(B * T)[None, :] // T
           == np.arange(B)[:, None]).astype(np.float64)          # (B, B*T)
    e_ft = np.zeros((B * Fb, B * K))                              # (B*F, B*K)
    for b in range(B):
        for f in range(Fb):
            e_ft[b * Fb + f, b * K + f * TT: b * K + (f + 1) * TT] = 1.0

    consts = {
        "s_t": shift_pair(B, T),
        "s_f": shift_pair(B, Fb),
        "e_b": e_b,
        "e_ft": e_ft,
        "f_re": blockdiag(f_re, B),
        "f_im": blockdiag(f_im, B),
        "i_re": blockdiag(i_re, B),
        "i_im": blockdiag(i_im, B),
    }
    return {k: jnp.asarray(v, jnp.float32) for k, v in consts.items()}


# ----------------------- parameters (init + fusion prep) -------------------

def init_params(key, C, pos_emb_dim, bsft_channels):
    in_cg = int(C * 0.5)
    in_cl = C - in_cg
    out_cg = int(2 * C * 0.5)
    out_cl = 2 * C - out_cg
    ks = jax.random.split(key, 16)
    n = lambda k, s: (0.1 * jax.random.normal(k, s)).astype(jnp.float32)
    return {
        "diff_w": n(ks[0], (C, pos_emb_dim)), "diff_b": n(ks[1], (C,)),
        "l2l_w": n(ks[2], (out_cl, in_cl, 3)),
        "l2g_w": n(ks[3], (out_cg, in_cl, 3)),
        "g2l_w": n(ks[4], (out_cl, in_cg, 3)),
        "st1_w": n(ks[5], (out_cg // 2, in_cg, 1)),
        "st2_w": n(ks[6], (out_cg, out_cg // 2, 1)),
        "fu_w": n(ks[7], (out_cg, out_cg, 1, 1)),
        "bs_shared_w": n(ks[8], (bsft_channels, 2, 3)),
        "bs_shared_b": n(ks[9], (bsft_channels,)),
        "bs_gamma_w": n(ks[10], (out_cg, bsft_channels, 3)),
        "bs_gamma_b": n(ks[11], (out_cg,)),
        "bs_beta_w": n(ks[12], (out_cg, bsft_channels, 3)),
        "bs_beta_b": n(ks[13], (out_cg,)),
        "out_w": n(ks[14], (2 * C, C, 1)), "out_b": n(ks[15], (2 * C,)),
    }


def prepare_params(params, C):
    """Stack / permute / 2-D-ify the raw weights once (model-load time)."""
    in_cg = C // 2
    in_cl = C - in_cg
    out_cg = C
    out_cl = C
    ch = out_cg // 2

    l2l, l2g, g2l = params["l2l_w"], params["l2g_w"], params["g2l_w"]
    st1 = params["st1_w"][:, :, 0]                      # (ch, in_cg)
    z_lg_g = jnp.zeros((out_cg, in_cg), jnp.float32)
    z_st_l = jnp.zeros((ch, in_cl), jnp.float32)
    z_st_g = jnp.zeros((ch, in_cg), jnp.float32)
    taps = []
    for k in range(3):
        blk_xl = jnp.concatenate([l2l[:, :, k], g2l[:, :, k]], axis=1)
        blk_lg = jnp.concatenate([l2g[:, :, k], z_lg_g], axis=1)
        blk_st = jnp.concatenate([z_st_l, st1 if k == 1 else z_st_g], axis=1)
        taps.append(jnp.concatenate([blk_xl, blk_lg, blk_st], axis=0))
    w_ffc = jnp.stack(taps, axis=0)                     # (3, 2C+ch, C)

    w_sh = jnp.stack([params["bs_shared_w"][:, :, k] for k in range(3)], 0)
    sh_b = params["bs_shared_b"][:, None]

    # de-interleave spectral channels: [re ch0..] then [im ch0..]
    perm = jnp.asarray([2 * c for c in range(ch)]
                       + [2 * c + 1 for c in range(ch)], jnp.int32)
    gw = params["bs_gamma_w"][perm]
    bw = params["bs_beta_w"][perm]
    w_gb = jnp.stack(
        [jnp.concatenate([gw[:, :, k], bw[:, :, k]], axis=0) for k in range(3)],
        axis=0)                                          # (3, 4*ch, NH)
    gb_b = jnp.concatenate([params["bs_gamma_b"][perm],
                            params["bs_beta_b"][perm]])[:, None]

    fu_w = params["fu_w"][:, :, 0, 0][perm][:, perm]     # (2ch, 2ch)
    st2_w = params["st2_w"][:, :, 0]                     # (out_cg, ch)
    ow = params["out_w"][:, :, 0]                        # (2C, C)
    h = out_cl // 2
    return {
        "diff_w": params["diff_w"], "diff_b": params["diff_b"][:, None],
        "w_ffc": w_ffc, "w_sh": w_sh, "sh_b": sh_b,
        "w_gb": w_gb, "gb_b": gb_b, "fu_w": fu_w, "st2_w": st2_w,
        "w_out_l": ow[:, :h], "w_out_g": ow[:, h:],
        "out_b": params["out_b"][:, None],
    }


# ----------------------------------- main -----------------------------------

if __name__ == "__main__":
    # small config: residual_channels=4, pos_emb_dim=8, bsft_channels=8,
    # audio_kwargs: filter_length=16, hop_length=4, win_length=16
    C, POS, NH = 4, 8, 8
    N_FFT, HOP, WIN = 16, 4, 16
    B, T = 2, 32                       # T multiple of hop
    F = N_FFT // 2 + 1                 # band length == num freq bins

    # torch.hann_window(win_length) (periodic)
    window = 0.5 - 0.5 * np.cos(2.0 * np.pi * np.arange(WIN) / WIN)

    key = jax.random.PRNGKey(0)
    kp, kx, kb, kn = jax.random.split(key, 4)
    params = init_params(kp, C, POS, NH)
    fused = prepare_params(params, C)
    consts = build_fourier_constants(B, T, N_FFT, HOP, window)

    x = jax.random.normal(kx, (B, C, T), dtype=jnp.float32)
    band = jax.random.normal(kb, (B, 2, F), dtype=jnp.float32)
    noise_level = jax.random.normal(kn, (B, POS), dtype=jnp.float32)

    fwd = jax.jit(residual_block_forward)
    out, skip = fwd(fused, consts, x, band, noise_level)
    jax.block_until_ready((out, skip))

    assert out.shape == (B, C, T) and skip.shape == (B, C, T)
    assert bool(jnp.all(jnp.isfinite(out))) and bool(jnp.all(jnp.isfinite(skip)))
    print("KERNEL_OK")
</pallas_src>

<mosaic_0001>
module attributes {stable_mosaic.version = 11 : i64} {
  func.func @_fused_kernel(%arg0: memref<4x64xf32, #tpu.memory_space<vmem>>, %arg1: memref<2x18xf32, #tpu.memory_space<vmem>>, %arg2: memref<8x2xf32, #tpu.memory_space<vmem>>, %arg3: memref<4x8xf32, #tpu.memory_space<vmem>>, %arg4: memref<4x1xf32, #tpu.memory_space<vmem>>, %arg5: memref<3x10x4xf32, #tpu.memory_space<vmem>>, %arg6: memref<3x8x2xf32, #tpu.memory_space<vmem>>, %arg7: memref<8x1xf32, #tpu.memory_space<vmem>>, %arg8: memref<3x8x8xf32, #tpu.memory_space<vmem>>, %arg9: memref<8x1xf32, #tpu.memory_space<vmem>>, %arg10: memref<4x4xf32, #tpu.memory_space<vmem>>, %arg11: memref<4x2xf32, #tpu.memory_space<vmem>>, %arg12: memref<8x2xf32, #tpu.memory_space<vmem>>, %arg13: memref<8x2xf32, #tpu.memory_space<vmem>>, %arg14: memref<8x1xf32, #tpu.memory_space<vmem>>, %arg15: memref<2x64x64xf32, #tpu.memory_space<vmem>>, %arg16: memref<2x18x18xf32, #tpu.memory_space<vmem>>, %arg17: memref<2x64xf32, #tpu.memory_space<vmem>>, %arg18: memref<18x162xf32, #tpu.memory_space<vmem>>, %arg19: memref<64x162xf32, #tpu.memory_space<vmem>>, %arg20: memref<64x162xf32, #tpu.memory_space<vmem>>, %arg21: memref<162x64xf32, #tpu.memory_space<vmem>>, %arg22: memref<162x64xf32, #tpu.memory_space<vmem>>, %arg23: memref<4x64xf32, #tpu.memory_space<vmem>>, %arg24: memref<4x64xf32, #tpu.memory_space<vmem>>) attributes {dimension_semantics = [], scalar_prefetch = 0 : i64, scratch_operands = 0 : i64, tpu.core_type = #tpu.core_type<tc>} {
    %c0 = arith.constant 0 : index
    %c0_0 = arith.constant 0 : index
    %0 = vector.load %arg0[%c0, %c0_0] : memref<4x64xf32, #tpu.memory_space<vmem>>, vector<4x64xf32>
    %c0_1 = arith.constant 0 : index
    %c0_2 = arith.constant 0 : index
    %1 = vector.load %arg3[%c0_1, %c0_2] : memref<4x8xf32, #tpu.memory_space<vmem>>, vector<4x8xf32>
    %c0_3 = arith.constant 0 : index
    %c0_4 = arith.constant 0 : index
    %2 = vector.load %arg2[%c0_3, %c0_4] : memref<8x2xf32, #tpu.memory_space<vmem>>, vector<8x2xf32>
    %cst = arith.constant dense<0.000000e+00> : vector<4x2xf32>
    %3 = tpu.matmul %1, %2, %cst {dimension_numbers = #tpu.dot_dimension_numbers<[1], [0], [0], [1], [0, 0, 1, 1], [], []>} : vector<4x8xf32>, vector<8x2xf32>, vector<4x2xf32> -> vector<4x2xf32>
    %c0_5 = arith.constant 0 : index
    %c0_6 = arith.constant 0 : index
    %4 = vector.load %arg4[%c0_5, %c0_6] : memref<4x1xf32, #tpu.memory_space<vmem>>, vector<4x1xf32>
    %5 = vector.broadcast %4 : vector<4x1xf32> to vector<4x2xf32>
    %6 = arith.addf %3, %5 : vector<4x2xf32>
    %c0_7 = arith.constant 0 : index
    %c0_8 = arith.constant 0 : index
    %7 = vector.load %arg17[%c0_7, %c0_8] : memref<2x64xf32, #tpu.memory_space<vmem>>, vector<2x64xf32>
    %cst_9 = arith.constant dense<0.000000e+00> : vector<4x64xf32>
    %8 = tpu.matmul %6, %7, %cst_9 {dimension_numbers = #tpu.dot_dimension_numbers<[1], [0], [0], [1], [0, 0, 1, 1], [], []>} : vector<4x2xf32>, vector<2x64xf32>, vector<4x64xf32> -> vector<4x64xf32>
    %9 = arith.addf %0, %8 : vector<4x64xf32>
    %c0_10 = arith.constant 0 : index
    %c0_11 = arith.constant 0 : index
    %c0_12 = arith.constant 0 : index
    %10 = vector.load %arg15[%c0_10, %c0_11, %c0_12] : memref<2x64x64xf32, #tpu.memory_space<vmem>>, vector<1x64x64xf32>
    %11 = vector.shape_cast %10 : vector<1x64x64xf32> to vector<64x64xf32>
    %cst_13 = arith.constant dense<0.000000e+00> : vector<4x64xf32>
    %12 = tpu.matmul %9, %11, %cst_13 {dimension_numbers = #tpu.dot_dimension_numbers<[1], [0], [0], [1], [0, 0, 1, 1], [], []>} : vector<4x64xf32>, vector<64x64xf32>, vector<4x64xf32> -> vector<4x64xf32>
    %c1 = arith.constant 1 : index
    %c0_14 = arith.constant 0 : index
    %c0_15 = arith.constant 0 : index
    %13 = vector.load %arg15[%c1, %c0_14, %c0_15] : memref<2x64x64xf32, #tpu.memory_space<vmem>>, vector<1x64x64xf32>
    %14 = vector.shape_cast %13 : vector<1x64x64xf32> to vector<64x64xf32>
    %cst_16 = arith.constant dense<0.000000e+00> : vector<4x64xf32>
    %15 = tpu.matmul %9, %14, %cst_16 {dimension_numbers = #tpu.dot_dimension_numbers<[1], [0], [0], [1], [0, 0, 1, 1], [], []>} : vector<4x64xf32>, vector<64x64xf32>, vector<4x64xf32> -> vector<4x64xf32>
    %c0_17 = arith.constant 0 : index
    %c0_18 = arith.constant 0 : index
    %c0_19 = arith.constant 0 : index
    %16 = vector.load %arg5[%c0_17, %c0_18, %c0_19] : memref<3x10x4xf32, #tpu.memory_space<vmem>>, vector<1x10x4xf32>
    %17 = vector.shape_cast %16 : vector<1x10x4xf32> to vector<10x4xf32>
    %cst_20 = arith.constant dense<0.000000e+00> : vector<10x64xf32>
    %18 = tpu.matmul %17, %12, %cst_20 {dimension_numbers = #tpu.dot_dimension_numbers<[1], [0], [0], [1], [0, 0, 1, 1], [], []>} : vector<10x4xf32>, vector<4x64xf32>, vector<10x64xf32> -> vector<10x64xf32>
    %c1_21 = arith.constant 1 : index
    %c0_22 = arith.constant 0 : index
    %c0_23 = arith.constant 0 : index
    %19 = vector.load %arg5[%c1_21, %c0_22, %c0_23] : memref<3x10x4xf32, #tpu.memory_space<vmem>>, vector<1x10x4xf32>
    %20 = vector.shape_cast %19 : vector<1x10x4xf32> to vector<10x4xf32>
    %cst_24 = arith.constant dense<0.000000e+00> : vector<10x64xf32>
    %21 = tpu.matmul %20, %9, %cst_24 {dimension_numbers = #tpu.dot_dimension_numbers<[1], [0], [0], [1], [0, 0, 1, 1], [], []>} : vector<10x4xf32>, vector<4x64xf32>, vector<10x64xf32> -> vector<10x64xf32>
    %22 = arith.addf %18, %21 : vector<10x64xf32>
    %c2 = arith.constant 2 : index
    %c0_25 = arith.constant 0 : index
    %c0_26 = arith.constant 0 : index
    %23 = vector.load %arg5[%c2, %c0_25, %c0_26] : memref<3x10x4xf32, #tpu.memory_space<vmem>>, vector<1x10x4xf32>
    %24 = vector.shape_cast %23 : vector<1x10x4xf32> to vector<10x4xf32>
    %cst_27 = arith.constant dense<0.000000e+00> : vector<10x64xf32>
    %25 = tpu.matmul %24, %15, %cst_27 {dimension_numbers = #tpu.dot_dimension_numbers<[1], [0], [0], [1], [0, 0, 1, 1], [], []>} : vector<10x4xf32>, vector<4x64xf32>, vector<10x64xf32> -> vector<10x64xf32>
    %26 = arith.addf %22, %25 : vector<10x64xf32>
    %27 = vector.extract_strided_slice %26 {offsets = [0, 0], sizes = [4, 64], strides = [1, 1]} : vector<10x64xf32> to vector<4x64xf32>
    %28 = vector.extract_strided_slice %26 {offsets = [4, 0], sizes = [4, 64], strides = [1, 1]} : vector<10x64xf32> to vector<4x64xf32>
    %29 = vector.extract_strided_slice %26 {offsets = [8, 0], sizes = [2, 64], strides = [1, 1]} : vector<10x64xf32> to vector<2x64xf32>
    %30 = arith.negf %29 : vector<2x64xf32>
    %31 = math.exp %30 : vector<2x64xf32>
    %cst_28 = arith.constant 1.000000e+00 : f32
    %32 = vector.broadcast %cst_28 : f32 to vector<2x64xf32>
    %33 = arith.addf %32, %31 : vector<2x64xf32>
    %34 = arith.divf %32, %33 : vector<2x64xf32>
    %35 = arith.mulf %29, %34 : vector<2x64xf32>
    %c0_29 = arith.constant 0 : index
    %c0_30 = arith.constant 0 : index
    %36 = vector.load %arg1[%c0_29, %c0_30] : memref<2x18xf32, #tpu.memory_space<vmem>>, vector<2x18xf32>
    %c0_31 = arith.constant 0 : index
    %c0_32 = arith.constant 0 : index
    %c0_33 = arith.constant 0 : index
    %37 = vector.load %arg16[%c0_31, %c0_32, %c0_33] : memref<2x18x18xf32, #tpu.memory_space<vmem>>, vector<1x18x18xf32>
    %38 = vector.shape_cast %37 : vector<1x18x18xf32> to vector<18x18xf32>
    %cst_34 = arith.constant dense<0.000000e+00> : vector<2x18xf32>
    %39 = tpu.matmul %36, %38, %cst_34 {dimension_numbers = #tpu.dot_dimension_numbers<[1], [0], [0], [1], [0, 0, 1, 1], [], []>} : vector<2x18xf32>, vector<18x18xf32>, vector<2x18xf32> -> vector<2x18xf32>
    %c1_35 = arith.constant 1 : index
    %c0_36 = arith.constant 0 : index
    %c0_37 = arith.constant 0 : index
    %40 = vector.load %arg16[%c1_35, %c0_36, %c0_37] : memref<2x18x18xf32, #tpu.memory_space<vmem>>, vector<1x18x18xf32>
    %41 = vector.shape_cast %40 : vector<1x18x18xf32> to vector<18x18xf32>
    %cst_38 = arith.constant dense<0.000000e+00> : vector<2x18xf32>
    %42 = tpu.matmul %36, %41, %cst_38 {dimension_numbers = #tpu.dot_dimension_numbers<[1], [0], [0], [1], [0, 0, 1, 1], [], []>} : vector<2x18xf32>, vector<18x18xf32>, vector<2x18xf32> -> vector<2x18xf32>
    %c0_39 = arith.constant 0 : index
    %c0_40 = arith.constant 0 : index
    %c0_41 = arith.constant 0 : index
    %43 = vector.load %arg6[%c0_39, %c0_40, %c0_41] : memref<3x8x2xf32, #tpu.memory_space<vmem>>, vector<1x8x2xf32>
    %44 = vector.shape_cast %43 : vector<1x8x2xf32> to vector<8x2xf32>
    %cst_42 = arith.constant dense<0.000000e+00> : vector<8x18xf32>
    %45 = tpu.matmul %44, %39, %cst_42 {dimension_numbers = #tpu.dot_dimension_numbers<[1], [0], [0], [1], [0, 0, 1, 1], [], []>} : vector<8x2xf32>, vector<2x18xf32>, vector<8x18xf32> -> vector<8x18xf32>
    %c1_43 = arith.constant 1 : index
    %c0_44 = arith.constant 0 : index
    %c0_45 = arith.constant 0 : index
    %46 = vector.load %arg6[%c1_43, %c0_44, %c0_45] : memref<3x8x2xf32, #tpu.memory_space<vmem>>, vector<1x8x2xf32>
    %47 = vector.shape_cast %46 : vector<1x8x2xf32> to vector<8x2xf32>
    %cst_46 = arith.constant dense<0.000000e+00> : vector<8x18xf32>
    %48 = tpu.matmul %47, %36, %cst_46 {dimension_numbers = #tpu.dot_dimension_numbers<[1], [0], [0], [1], [0, 0, 1, 1], [], []>} : vector<8x2xf32>, vector<2x18xf32>, vector<8x18xf32> -> vector<8x18xf32>
    %49 = arith.addf %45, %48 : vector<8x18xf32>
    %c2_47 = arith.constant 2 : index
    %c0_48 = arith.constant 0 : index
    %c0_49 = arith.constant 0 : index
    %50 = vector.load %arg6[%c2_47, %c0_48, %c0_49] : memref<3x8x2xf32, #tpu.memory_space<vmem>>, vector<1x8x2xf32>
    %51 = vector.shape_cast %50 : vector<1x8x2xf32> to vector<8x2xf32>
    %cst_50 = arith.constant dense<0.000000e+00> : vector<8x18xf32>
    %52 = tpu.matmul %51, %42, %cst_50 {dimension_numbers = #tpu.dot_dimension_numbers<[1], [0], [0], [1], [0, 0, 1, 1], [], []>} : vector<8x2xf32>, vector<2x18xf32>, vector<8x18xf32> -> vector<8x18xf32>
    %53 = arith.addf %49, %52 : vector<8x18xf32>
    %c0_51 = arith.constant 0 : index
    %c0_52 = arith.constant 0 : index
    %54 = vector.load %arg7[%c0_51, %c0_52] : memref<8x1xf32, #tpu.memory_space<vmem>>, vector<8x1xf32>
    %55 = vector.broadcast %54 : vector<8x1xf32> to vector<8x18xf32>
    %56 = arith.addf %53, %55 : vector<8x18xf32>
    %57 = arith.negf %56 : vector<8x18xf32>
    %58 = math.exp %57 : vector<8x18xf32>
    %cst_53 = arith.constant 1.000000e+00 : f32
    %59 = vector.broadcast %cst_53 : f32 to vector<8x18xf32>
    %60 = arith.addf %59, %58 : vector<8x18xf32>
    %61 = arith.divf %59, %60 : vector<8x18xf32>
    %62 = arith.mulf %56, %61 : vector<8x18xf32>
    %c0_54 = arith.constant 0 : index
    %c0_55 = arith.constant 0 : index
    %c0_56 = arith.constant 0 : index
    %63 = vector.load %arg16[%c0_54, %c0_55, %c0_56] : memref<2x18x18xf32, #tpu.memory_space<vmem>>, vector<1x18x18xf32>
    %64 = vector.shape_cast %63 : vector<1x18x18xf32> to vector<18x18xf32>
    %cst_57 = arith.constant dense<0.000000e+00> : vector<8x18xf32>
    %65 = tpu.matmul %62, %64, %cst_57 {dimension_numbers = #tpu.dot_dimension_numbers<[1], [0], [0], [1], [0, 0, 1, 1], [], []>} : vector<8x18xf32>, vector<18x18xf32>, vector<8x18xf32> -> vector<8x18xf32>
    %c1_58 = arith.constant 1 : index
    %c0_59 = arith.constant 0 : index
    %c0_60 = arith.constant 0 : index
    %66 = vector.load %arg16[%c1_58, %c0_59, %c0_60] : memref<2x18x18xf32, #tpu.memory_space<vmem>>, vector<1x18x18xf32>
    %67 = vector.shape_cast %66 : vector<1x18x18xf32> to vector<18x18xf32>
    %cst_61 = arith.constant dense<0.000000e+00> : vector<8x18xf32>
    %68 = tpu.matmul %62, %67, %cst_61 {dimension_numbers = #tpu.dot_dimension_numbers<[1], [0], [0], [1], [0, 0, 1, 1], [], []>} : vector<8x18xf32>, vector<18x18xf32>, vector<8x18xf32> -> vector<8x18xf32>
    %c0_62 = arith.constant 0 : index
    %c0_63 = arith.constant 0 : index
    %c0_64 = arith.constant 0 : index
    %69 = vector.load %arg8[%c0_62, %c0_63, %c0_64] : memref<3x8x8xf32, #tpu.memory_space<vmem>>, vector<1x8x8xf32>
    %70 = vector.shape_cast %69 : vector<1x8x8xf32> to vector<8x8xf32>
    %cst_65 = arith.constant dense<0.000000e+00> : vector<8x18xf32>
    %71 = tpu.matmul %70, %65, %cst_65 {dimension_numbers = #tpu.dot_dimension_numbers<[1], [0], [0], [1], [0, 0, 1, 1], [], []>} : vector<8x8xf32>, vector<8x18xf32>, vector<8x18xf32> -> vector<8x18xf32>
    %c1_66 = arith.constant 1 : index
    %c0_67 = arith.constant 0 : index
    %c0_68 = arith.constant 0 : index
    %72 = vector.load %arg8[%c1_66, %c0_67, %c0_68] : memref<3x8x8xf32, #tpu.memory_space<vmem>>, vector<1x8x8xf32>
    %73 = vector.shape_cast %72 : vector<1x8x8xf32> to vector<8x8xf32>
    %cst_69 = arith.constant dense<0.000000e+00> : vector<8x18xf32>
    %74 = tpu.matmul %73, %62, %cst_69 {dimension_numbers = #tpu.dot_dimension_numbers<[1], [0], [0], [1], [0, 0, 1, 1], [], []>} : vector<8x8xf32>, vector<8x18xf32>, vector<8x18xf32> -> vector<8x18xf32>
    %75 = arith.addf %71, %74 : vector<8x18xf32>
    %c2_70 = arith.constant 2 : index
    %c0_71 = arith.constant 0 : index
    %c0_72 = arith.constant 0 : index
    %76 = vector.load %arg8[%c2_70, %c0_71, %c0_72] : memref<3x8x8xf32, #tpu.memory_space<vmem>>, vector<1x8x8xf32>
    %77 = vector.shape_cast %76 : vector<1x8x8xf32> to vector<8x8xf32>
    %cst_73 = arith.constant dense<0.000000e+00> : vector<8x18xf32>
    %78 = tpu.matmul %77, %68, %cst_73 {dimension_numbers = #tpu.dot_dimension_numbers<[1], [0], [0], [1], [0, 0, 1, 1], [], []>} : vector<8x8xf32>, vector<8x18xf32>, vector<8x18xf32> -> vector<8x18xf32>
    %79 = arith.addf %75, %78 : vector<8x18xf32>
    %c0_74 = arith.constant 0 : index
    %c0_75 = arith.constant 0 : index
    %80 = vector.load %arg9[%c0_74, %c0_75] : memref<8x1xf32, #tpu.memory_space<vmem>>, vector<8x1xf32>
    %81 = vector.broadcast %80 : vector<8x1xf32> to vector<8x18xf32>
    %82 = arith.addf %79, %81 : vector<8x18xf32>
    %83 = vector.extract_strided_slice %82 {offsets = [0, 0], sizes = [4, 18], strides = [1, 1]} : vector<8x18xf32> to vector<4x18xf32>
    %c0_76 = arith.constant 0 : index
    %c0_77 = arith.constant 0 : index
    %84 = vector.load %arg18[%c0_76, %c0_77] : memref<18x162xf32, #tpu.memory_space<vmem>>, vector<18x162xf32>
    %cst_78 = arith.constant dense<0.000000e+00> : vector<4x162xf32>
    %85 = tpu.matmul %83, %84, %cst_78 {dimension_numbers = #tpu.dot_dimension_numbers<[1], [0], [0], [1], [0, 0, 1, 1], [], []>} : vector<4x18xf32>, vector<18x162xf32>, vector<4x162xf32> -> vector<4x162xf32>
    %86 = vector.extract_strided_slice %82 {offsets = [4, 0], sizes = [4, 18], strides = [1, 1]} : vector<8x18xf32> to vector<4x18xf32>
    %c0_79 = arith.constant 0 : index
    %c0_80 = arith.constant 0 : index
    %87 = vector.load %arg18[%c0_79, %c0_80] : memref<18x162xf32, #tpu.memory_space<vmem>>, vector<18x162xf32>
    %cst_81 = arith.constant dense<0.000000e+00> : vector<4x162xf32>
    %88 = tpu.matmul %86, %87, %cst_81 {dimension_numbers = #tpu.dot_dimension_numbers<[1], [0], [0], [1], [0, 0, 1, 1], [], []>} : vector<4x18xf32>, vector<18x162xf32>, vector<4x162xf32> -> vector<4x162xf32>
    %c0_82 = arith.constant 0 : index
    %c0_83 = arith.constant 0 : index
    %89 = vector.load %arg19[%c0_82, %c0_83] : memref<64x162xf32, #tpu.memory_space<vmem>>, vector<64x162xf32>
    %cst_84 = arith.constant dense<0.000000e+00> : vector<2x162xf32>
    %90 = tpu.matmul %35, %89, %cst_84 {dimension_numbers = #tpu.dot_dimension_numbers<[1], [0], [0], [1], [0, 0, 1, 1], [], []>} : vector<2x64xf32>, vector<64x162xf32>, vector<2x162xf32> -> vector<2x162xf32>
    %c0_85 = arith.constant 0 : index
    %c0_86 = arith.constant 0 : index
    %91 = vector.load %arg20[%c0_85, %c0_86] : memref<64x162xf32, #tpu.memory_space<vmem>>, vector<64x162xf32>
    %cst_87 = arith.constant dense<0.000000e+00> : vector<2x162xf32>
    %92 = tpu.matmul %35, %91, %cst_87 {dimension_numbers = #tpu.dot_dimension_numbers<[1], [0], [0], [1], [0, 0, 1, 1], [], []>} : vector<2x64xf32>, vector<64x162xf32>, vector<2x162xf32> -> vector<2x162xf32>
    %93 = vector.extract_strided_slice %85 {offsets = [0, 0], sizes = [2, 162], strides = [1, 1]} : vector<4x162xf32> to vector<2x162xf32>
    %cst_88 = arith.constant 1.000000e+00 : f32
    %94 = vector.broadcast %cst_88 : f32 to vector<2x162xf32>
    %95 = arith.addf %94, %93 : vector<2x162xf32>
    %96 = arith.mulf %90, %95 : vector<2x162xf32>
    %97 = vector.extract_strided_slice %88 {offsets = [0, 0], sizes = [2, 162], strides = [1, 1]} : vector<4x162xf32> to vector<2x162xf32>
    %98 = arith.addf %96, %97 : vector<2x162xf32>
    %cst_89 = arith.constant 0.000000e+00 : f32
    %99 = vector.broadcast %cst_89 : f32 to vector<2x162xf32>
    %100 = arith.maximumf %98, %99 : vector<2x162xf32>
    %101 = vector.extract_strided_slice %85 {offsets = [2, 0], sizes = [2, 162], strides = [1, 1]} : vector<4x162xf32> to vector<2x162xf32>
    %cst_90 = arith.constant 1.000000e+00 : f32
    %102 = vector.broadcast %cst_90 : f32 to vector<2x162xf32>
    %103 = arith.addf %102, %101 : vector<2x162xf32>
    %104 = arith.mulf %92, %103 : vector<2x162xf32>
    %105 = vector.extract_strided_slice %88 {offsets = [2, 0], sizes = [2, 162], strides = [1, 1]} : vector<4x162xf32> to vector<2x162xf32>
    %106 = arith.addf %104, %105 : vector<2x162xf32>
    %cst_91 = arith.constant 0.000000e+00 : f32
    %107 = vector.broadcast %cst_91 : f32 to vector<2x162xf32>
    %108 = arith.maximumf %106, %107 : vector<2x162xf32>
    %c0_92 = arith.constant 0 : index
    %c0_93 = arith.constant 0 : index
    %109 = vector.load %arg10[%c0_92, %c0_93] : memref<4x4xf32, #tpu.memory_space<vmem>>, vector<4x4xf32>
    %110 = vector.extract_strided_slice %109 {offsets = [0, 0], sizes = [2, 2], strides = [1, 1]} : vector<4x4xf32> to vector<2x2xf32>
    %cst_94 = arith.constant dense<0.000000e+00> : vector<2x162xf32>
    %111 = tpu.matmul %110, %100, %cst_94 {dimension_numbers = #tpu.dot_dimension_numbers<[1], [0], [0], [1], [0, 0, 1, 1], [], []>} : vector<2x2xf32>, vector<2x162xf32>, vector<2x162xf32> -> vector<2x162xf32>
    %112 = vector.extract_strided_slice %109 {offsets = [0, 2], sizes = [2, 2], strides = [1, 1]} : vector<4x4xf32> to vector<2x2xf32>
    %cst_95 = arith.constant dense<0.000000e+00> : vector<2x162xf32>
    %113 = tpu.matmul %112, %108, %cst_95 {dimension_numbers = #tpu.dot_dimension_numbers<[1], [0], [0], [1], [0, 0, 1, 1], [], []>} : vector<2x2xf32>, vector<2x162xf32>, vector<2x162xf32> -> vector<2x162xf32>
    %114 = arith.addf %111, %113 : vector<2x162xf32>
    %115 = vector.extract_strided_slice %109 {offsets = [2, 0], sizes = [2, 2], strides = [1, 1]} : vector<4x4xf32> to vector<2x2xf32>
    %cst_96 = arith.constant dense<0.000000e+00> : vector<2x162xf32>
    %116 = tpu.matmul %115, %100, %cst_96 {dimension_numbers = #tpu.dot_dimension_numbers<[1], [0], [0], [1], [0, 0, 1, 1], [], []>} : vector<2x2xf32>, vector<2x162xf32>, vector<2x162xf32> -> vector<2x162xf32>
    %117 = vector.extract_strided_slice %109 {offsets = [2, 2], sizes = [2, 2], strides = [1, 1]} : vector<4x4xf32> to vector<2x2xf32>
    %cst_97 = arith.constant dense<0.000000e+00> : vector<2x162xf32>
    %118 = tpu.matmul %117, %108, %cst_97 {dimension_numbers = #tpu.dot_dimension_numbers<[1], [0], [0], [1], [0, 0, 1, 1], [], []>} : vector<2x2xf32>, vector<2x162xf32>, vector<2x162xf32> -> vector<2x162xf32>
    %119 = arith.addf %116, %118 : vector<2x162xf32>
    %c0_98 = arith.constant 0 : index
    %c0_99 = arith.constant 0 : index
    %120 = vector.load %arg21[%c0_98, %c0_99] : memref<162x64xf32, #tpu.memory_space<vmem>>, vector<162x64xf32>
    %cst_100 = arith.constant dense<0.000000e+00> : vector<2x64xf32>
    %121 = tpu.matmul %114, %120, %cst_100 {dimension_numbers = #tpu.dot_dimension_numbers<[1], [0], [0], [1], [0, 0, 1, 1], [], []>} : vector<2x162xf32>, vector<162x64xf32>, vector<2x64xf32> -> vector<2x64xf32>
    %c0_101 = arith.constant 0 : index
    %c0_102 = arith.constant 0 : index
    %122 = vector.load %arg22[%c0_101, %c0_102] : memref<162x64xf32, #tpu.memory_space<vmem>>, vector<162x64xf32>
    %cst_103 = arith.constant dense<0.000000e+00> : vector<2x64xf32>
    %123 = tpu.matmul %119, %122, %cst_103 {dimension_numbers = #tpu.dot_dimension_numbers<[1], [0], [0], [1], [0, 0, 1, 1], [], []>} : vector<2x162xf32>, vector<162x64xf32>, vector<2x64xf32> -> vector<2x64xf32>
    %124 = arith.addf %121, %123 : vector<2x64xf32>
    %c0_104 = arith.constant 0 : index
    %c0_105 = arith.constant 0 : index
    %125 = vector.load %arg11[%c0_104, %c0_105] : memref<4x2xf32, #tpu.memory_space<vmem>>, vector<4x2xf32>
    %126 = arith.addf %35, %124 : vector<2x64xf32>
    %cst_106 = arith.constant dense<0.000000e+00> : vector<4x64xf32>
    %127 = tpu.matmul %125, %126, %cst_106 {dimension_numbers = #tpu.dot_dimension_numbers<[1], [0], [0], [1], [0, 0, 1, 1], [], []>} : vector<4x2xf32>, vector<2x64xf32>, vector<4x64xf32> -> vector<4x64xf32>
    %128 = arith.addf %28, %127 : vector<4x64xf32>
    %129 = vector.extract_strided_slice %27 {offsets = [0, 0], sizes = [2, 64], strides = [1, 1]} : vector<4x64xf32> to vector<2x64xf32>
    %130 = arith.negf %129 : vector<2x64xf32>
    %131 = math.exp %130 : vector<2x64xf32>
    %cst_107 = arith.constant 1.000000e+00 : f32
    %132 = vector.broadcast %cst_107 : f32 to vector<2x64xf32>
    %133 = arith.addf %132, %131 : vector<2x64xf32>
    %134 = arith.divf %132, %133 : vector<2x64xf32>
    %135 = vector.extract_strided_slice %27 {offsets = [2, 0], sizes = [2, 64], strides = [1, 1]} : vector<4x64xf32> to vector<2x64xf32>
    %136 = math.tanh %135 : vector<2x64xf32>
    %137 = arith.mulf %134, %136 : vector<2x64xf32>
    %138 = vector.extract_strided_slice %128 {offsets = [0, 0], sizes = [2, 64], strides = [1, 1]} : vector<4x64xf32> to vector<2x64xf32>
    %139 = arith.negf %138 : vector<2x64xf32>
    %140 = math.exp %139 : vector<2x64xf32>
    %cst_108 = arith.constant 1.000000e+00 : f32
    %141 = vector.broadcast %cst_108 : f32 to vector<2x64xf32>
    %142 = arith.addf %141, %140 : vector<2x64xf32>
    %143 = arith.divf %141, %142 : vector<2x64xf32>
    %144 = vector.extract_strided_slice %128 {offsets = [2, 0], sizes = [2, 64], strides = [1, 1]} : vector<4x64xf32> to vector<2x64xf32>
    %145 = math.tanh %144 : vector<2x64xf32>
    %146 = arith.mulf %143, %145 : vector<2x64xf32>
    %c0_109 = arith.constant 0 : index
    %c0_110 = arith.constant 0 : index
    %147 = vector.load %arg12[%c0_109, %c0_110] : memref<8x2xf32, #tpu.memory_space<vmem>>, vector<8x2xf32>
    %cst_111 = arith.constant dense<0.000000e+00> : vector<8x64xf32>
    %148 = tpu.matmul %147, %137, %cst_111 {dimension_numbers = #tpu.dot_dimension_numbers<[1], [0], [0], [1], [0, 0, 1, 1], [], []>} : vector<8x2xf32>, vector<2x64xf32>, vector<8x64xf32> -> vector<8x64xf32>
    %c0_112 = arith.constant 0 : index
    %c0_113 = arith.constant 0 : index
    %149 = vector.load %arg13[%c0_112, %c0_113] : memref<8x2xf32, #tpu.memory_space<vmem>>, vector<8x2xf32>
    %cst_114 = arith.constant dense<0.000000e+00> : vector<8x64xf32>
    %150 = tpu.matmul %149, %146, %cst_114 {dimension_numbers = #tpu.dot_dimension_numbers<[1], [0], [0], [1], [0, 0, 1, 1], [], []>} : vector<8x2xf32>, vector<2x64xf32>, vector<8x64xf32> -> vector<8x64xf32>
    %151 = arith.addf %148, %150 : vector<8x64xf32>
    %c0_115 = arith.constant 0 : index
    %c0_116 = arith.constant 0 : index
    %152 = vector.load %arg14[%c0_115, %c0_116] : memref<8x1xf32, #tpu.memory_space<vmem>>, vector<8x1xf32>
    %153 = vector.broadcast %152 : vector<8x1xf32> to vector<8x64xf32>
    %154 = arith.addf %151, %153 : vector<8x64xf32>
    %155 = vector.extract_strided_slice %154 {offsets = [0, 0], sizes = [4, 64], strides = [1, 1]} : vector<8x64xf32> to vector<4x64xf32>
    %156 = arith.addf %0, %155 : vector<4x64xf32>
    %cst_117 = arith.constant 0.707106769 : f32
    %157 = vector.broadcast %cst_117 : f32 to vector<4x64xf32>
    %158 = arith.mulf %156, %157 : vector<4x64xf32>
    %c0_118 = arith.constant 0 : index
    %c0_119 = arith.constant 0 : index
    %159 = vector.load %arg23[%c0_118, %c0_119] : memref<4x64xf32, #tpu.memory_space<vmem>>, vector<4x64xf32>
    tpu.vector_store %arg23[%c0_118, %c0_119], %158 {strides = array<i32>} : memref<4x64xf32, #tpu.memory_space<vmem>>, vector<4x64xf32>,
    %160 = vector.extract_strided_slice %154 {offsets = [4, 0], sizes = [4, 64], strides = [1, 1]} : vector<8x64xf32> to vector<4x64xf32>
    %c0_120 = arith.constant 0 : index
    %c0_121 = arith.constant 0 : index
    %161 = vector.load %arg24[%c0_120, %c0_121] : memref<4x64xf32, #tpu.memory_space<vmem>>, vector<4x64xf32>
    tpu.vector_store %arg24[%c0_120, %c0_121], %160 {strides = array<i32>} : memref<4x64xf32, #tpu.memory_space<vmem>>, vector<4x64xf32>,
    return
  }
}

</mosaic_0001>

<llo_original>
// kernel: residual_block_forward.1
$region0: #{residual_block_forward.1}
  #allocation0 [shape = 'u32[]', space=smem, size = 0x4, offset = 0x4, fixed_abs, tag = 'smem constant byte address 0x4 - core index']
  #allocation1 [shape = 'u32[72,128]{1,0:T(1,128)}', space=vmem, size = 0x9000, scoped, tag = 'internal scratch']
  %s0 = inlined_call_operand.vmem [shape: f32[4,64], index: 0, kind: input, shape index: {}]
  %s1 = inlined_call_operand.vmem [shape: f32[2,18], index: 1, kind: input, shape index: {}]
  %s2 = inlined_call_operand.vmem [shape: f32[8,2], index: 2, kind: input, shape index: {}]
  %s3 = inlined_call_operand.vmem [shape: f32[4,8], index: 3, kind: input, shape index: {}]
  %s4 = inlined_call_operand.vmem [shape: f32[4,1], index: 4, kind: input, shape index: {}]
  %s5 = inlined_call_operand.vmem [shape: f32[3,10,4], index: 5, kind: input, shape index: {}]
  %s6 = inlined_call_operand.vmem [shape: f32[3,8,2], index: 6, kind: input, shape index: {}]
  %s7 = inlined_call_operand.vmem [shape: f32[8,1], index: 7, kind: input, shape index: {}]
  %s8 = inlined_call_operand.vmem [shape: f32[3,8,8], index: 8, kind: input, shape index: {}]
  %s9 = inlined_call_operand.vmem [shape: f32[8,1], index: 9, kind: input, shape index: {}]
  %s10 = inlined_call_operand.vmem [shape: f32[4,4], index: 10, kind: input, shape index: {}]
  %s11 = inlined_call_operand.vmem [shape: f32[4,2], index: 11, kind: input, shape index: {}]
  %s12 = inlined_call_operand.vmem [shape: f32[8,2], index: 12, kind: input, shape index: {}]
  %s13 = inlined_call_operand.vmem [shape: f32[8,2], index: 13, kind: input, shape index: {}]
  %s14 = inlined_call_operand.vmem [shape: f32[8,1], index: 14, kind: input, shape index: {}]
  %s15 = inlined_call_operand.vmem [shape: f32[2,64,64], index: 15, kind: input, shape index: {}]
  %s16 = inlined_call_operand.vmem [shape: f32[2,18,18], index: 16, kind: input, shape index: {}]
  %s17 = inlined_call_operand.vmem [shape: f32[2,64], index: 17, kind: input, shape index: {}]
  %s18 = inlined_call_operand.vmem [shape: f32[18,162], index: 18, kind: input, shape index: {}]
  %s19 = inlined_call_operand.vmem [shape: f32[64,162], index: 19, kind: input, shape index: {}]
  %s20 = inlined_call_operand.vmem [shape: f32[64,162], index: 20, kind: input, shape index: {}]
  %s21 = inlined_call_operand.vmem [shape: f32[162,64], index: 21, kind: input, shape index: {}]
  %s22 = inlined_call_operand.vmem [shape: f32[162,64], index: 22, kind: input, shape index: {}]
  %s23 = inlined_call_operand.vmem [shape: f32[4,64], index: 23, kind: output, shape index: {0}]
  %s24 = inlined_call_operand.vmem [shape: f32[4,64], index: 24, kind: output, shape index: {1}]
  %25 = xla_tuple %s23, %s24
  %s26 = sld [smem:[#allocation0]]
  $region110: #{residual_block_forward.1} parent=0
    _
  %s28 = ssub.s32 1, %s26
  %s29 = scalar_select 0, %s28, %s26
  // Predicated region
  $region2: #{residual_block_forward.1} parent=0 // pred_check
    _
  $region3: #{residual_block_forward.1} parent=0 // pred_check_branch
    %31 = sbr.rel (0) target = $region5
  $region4: #{residual_block_forward.1} parent=0 // pred_region
    _
  $region5: #{residual_block_forward.1} parent=0 // pred_fallthru
    _
  // Predicated region
  $region6: #{residual_block_forward.1} parent=0 // pred_check
    _
  $region7: #{residual_block_forward.1} parent=0 // pred_check_branch
    %33 = sbr.rel (0) target = $region9
  $region8: #{residual_block_forward.1} parent=0 // pred_region
    _
  $region9: #{residual_block_forward.1} parent=0 // pred_fallthru
    _
  // Predicated region
  $region10: #{residual_block_forward.1} parent=0 // pred_check
    _
  $region11: #{residual_block_forward.1} parent=0 // pred_check_branch
    %35 = sbr.rel (0) target = $region13
  $region12: #{residual_block_forward.1} parent=0 // pred_region
    _
  $region13: #{residual_block_forward.1} parent=0 // pred_fallthru
    _
  // Predicated region
  $region14: #{residual_block_forward.1} parent=0 // pred_check
    _
  $region15: #{residual_block_forward.1} parent=0 // pred_check_branch
    %37 = sbr.rel (0) target = $region17
  $region16: #{residual_block_forward.1} parent=0 // pred_region
    _
  $region17: #{residual_block_forward.1} parent=0 // pred_fallthru
    _
  // Predicated region
  $region18: #{residual_block_forward.1} parent=0 // pred_check
    _
  $region19: #{residual_block_forward.1} parent=0 // pred_check_branch
    %39 = sbr.rel (0) target = $region21
  $region20: #{residual_block_forward.1} parent=0 // pred_region
    _
  $region21: #{residual_block_forward.1} parent=0 // pred_fallthru
    _
  // Predicated region
  $region22: #{residual_block_forward.1} parent=0 // pred_check
    _
  $region23: #{residual_block_forward.1} parent=0 // pred_check_branch
    %41 = sbr.rel (0) target = $region25
  $region24: #{residual_block_forward.1} parent=0 // pred_region
    _
  $region25: #{residual_block_forward.1} parent=0 // pred_fallthru
    _
  // Predicated region
  $region26: #{residual_block_forward.1} parent=0 // pred_check
    _
  $region27: #{residual_block_forward.1} parent=0 // pred_check_branch
    %43 = sbr.rel (0) target = $region29
  $region28: #{residual_block_forward.1} parent=0 // pred_region
    _
  $region29: #{residual_block_forward.1} parent=0 // pred_fallthru
    _
  // Predicated region
  $region30: #{residual_block_forward.1} parent=0 // pred_check
    _
  $region31: #{residual_block_forward.1} parent=0 // pred_check_branch
    %45 = sbr.rel (0) target = $region33
  $region32: #{residual_block_forward.1} parent=0 // pred_region
    _
  $region33: #{residual_block_forward.1} parent=0 // pred_fallthru
    _
  // Predicated region
  $region34: #{residual_block_forward.1} parent=0 // pred_check
    _
  $region35: #{residual_block_forward.1} parent=0 // pred_check_branch
    %47 = sbr.rel (0) target = $region37
  $region36: #{residual_block_forward.1} parent=0 // pred_region
    _
  $region37: #{residual_block_forward.1} parent=0 // pred_fallthru
    _
  // Predicated region
  $region38: #{residual_block_forward.1} parent=0 // pred_check
    _
  $region39: #{residual_block_forward.1} parent=0 // pred_check_branch
    %49 = sbr.rel (0) target = $region41
  $region40: #{residual_block_forward.1} parent=0 // pred_region
    _
  $region41: #{residual_block_forward.1} parent=0 // pred_fallthru
    _
  // Predicated region
  $region42: #{residual_block_forward.1} parent=0 // pred_check
    _
  $region43: #{residual_block_forward.1} parent=0 // pred_check_branch
    %51 = sbr.rel (0) target = $region45
  $region44: #{residual_block_forward.1} parent=0 // pred_region
    _
  $region45: #{residual_block_forward.1} parent=0 // pred_fallthru
    _
  // Predicated region
  $region46: #{residual_block_forward.1} parent=0 // pred_check
    _
  $region47: #{residual_block_forward.1} parent=0 // pred_check_branch
    %53 = sbr.rel (0) target = $region49
  $region48: #{residual_block_forward.1} parent=0 // pred_region
    _
  $region49: #{residual_block_forward.1} parent=0 // pred_fallthru
    _
  // Predicated region
  $region50: #{residual_block_forward.1} parent=0 // pred_check
    _
  $region51: #{residual_block_forward.1} parent=0 // pred_check_branch
    %55 = sbr.rel (0) target = $region53
  $region52: #{residual_block_forward.1} parent=0 // pred_region
    _
  $region53: #{residual_block_forward.1} parent=0 // pred_fallthru
    _
  // Predicated region
  $region54: #{residual_block_forward.1} parent=0 // pred_check
    _
  $region55: #{residual_block_forward.1} parent=0 // pred_check_branch
    %57 = sbr.rel (0) target = $region57
  $region56: #{residual_block_forward.1} parent=0 // pred_region
    _
  $region57: #{residual_block_forward.1} parent=0 // pred_fallthru
    _
  // Predicated region
  $region58: #{residual_block_forward.1} parent=0 // pred_check
    _
  $region59: #{residual_block_forward.1} parent=0 // pred_check_branch
    %59 = sbr.rel (0) target = $region61
  $region60: #{residual_block_forward.1} parent=0 // pred_region
    _
  $region61: #{residual_block_forward.1} parent=0 // pred_fallthru
    _
  // Predicated region
  $region62: #{residual_block_forward.1} parent=0 // pred_check
    _
  $region63: #{residual_block_forward.1} parent=0 // pred_check_branch
    %61 = sbr.rel (0) target = $region65
  $region64: #{residual_block_forward.1} parent=0 // pred_region
    _
  $region65: #{residual_block_forward.1} parent=0 // pred_fallthru
    _
  // Predicated region
  $region66: #{residual_block_forward.1} parent=0 // pred_check
    _
  $region67: #{residual_block_forward.1} parent=0 // pred_check_branch
    %63 = sbr.rel (0) target = $region69
  $region68: #{residual_block_forward.1} parent=0 // pred_region
    _
  $region69: #{residual_block_forward.1} parent=0 // pred_fallthru
    _
  // Predicated region
  $region70: #{residual_block_forward.1} parent=0 // pred_check
    _
  $region71: #{residual_block_forward.1} parent=0 // pred_check_branch
    %65 = sbr.rel (0) target = $region73
  $region72: #{residual_block_forward.1} parent=0 // pred_region
    _
  $region73: #{residual_block_forward.1} parent=0 // pred_fallthru
    _
  // Predicated region
  $region74: #{residual_block_forward.1} parent=0 // pred_check
    _
  $region75: #{residual_block_forward.1} parent=0 // pred_check_branch
    %67 = sbr.rel (0) target = $region77
  $region76: #{residual_block_forward.1} parent=0 // pred_region
    _
  $region77: #{residual_block_forward.1} parent=0 // pred_fallthru
    _
  // Predicated region
  $region78: #{residual_block_forward.1} parent=0 // pred_check
    _
  $region79: #{residual_block_forward.1} parent=0 // pred_check_branch
    %69 = sbr.rel (0) target = $region81
  $region80: #{residual_block_forward.1} parent=0 // pred_region
    _
  $region81: #{residual_block_forward.1} parent=0 // pred_fallthru
    _
  // Predicated region
  $region82: #{residual_block_forward.1} parent=0 // pred_check
    _
  $region83: #{residual_block_forward.1} parent=0 // pred_check_branch
    %71 = sbr.rel (0) target = $region85
  $region84: #{residual_block_forward.1} parent=0 // pred_region
    _
  $region85: #{residual_block_forward.1} parent=0 // pred_fallthru
    _
  // Predicated region
  $region86: #{residual_block_forward.1} parent=0 // pred_check
    _
  $region87: #{residual_block_forward.1} parent=0 // pred_check_branch
    %73 = sbr.rel (0) target = $region89
  $region88: #{residual_block_forward.1} parent=0 // pred_region
    _
  $region89: #{residual_block_forward.1} parent=0 // pred_fallthru
    _
  // Predicated region
  $region90: #{residual_block_forward.1} parent=0 // pred_check
    _
  $region91: #{residual_block_forward.1} parent=0 // pred_check_branch
    %75 = sbr.rel (0) target = $region93
  $region92: #{residual_block_forward.1} parent=0 // pred_region
    _
  $region93: #{residual_block_forward.1} parent=0 // pred_fallthru
    _
  %v76 = vld [vmem:[%s0] sm:$0xf]
  %v77 = vld [vmem:[%s3] sm:$0xf]
  %v78 = vld [vmem:[%s2] sm:$0xff]
  %v79 = vld [vmem:[%s4] sm:$0xf]
  %81 = vset.pattern.permute.xlu0 0
  %82 = vperm.xlu0 %81, %v79
  %v83 = vpop.permute.xlu0 %82
  %vm85 = vcmask 64512
  %v87 = vsel %vm85, %v77, 0
  %89 = vmatpush.msra.mxu0 0.0
  %90 = vmatpush.msra.mxu0 0.0
  %91 = vmatpush.msra.mxu0 0.0
  %92 = vmatpush.msra.mxu0 0.0
  %93 = vmatpush.msra.mxu0 0.0
  %94 = vmatpush.msra.mxu0 0.0
  %95 = vmatpush.msra.mxu0 0.0
  %96 = vmatpush.msra.mxu0 0.0
  %97 = vmatpush.msra.mxu0 0.0
  %98 = vmatpush.msra.mxu0 0.0
  %99 = vmatpush.msra.mxu0 0.0
  %100 = vmatpush.msra.mxu0 0.0
  %101 = vmatpush.msra.mxu0 0.0
  %102 = vmatpush.msra.mxu0 0.0
  %103 = vmatpush.msra.mxu0 0.0
  %104 = vmatpush.msra.mxu0 %v78
  %105 = vmatmul.f32.gmra.mxu0 %v87
  %v106 = vpop.f32.mrf.mxu0
  %v107 = vadd.f32 %v83, %v106
  %108 = vdwg.mxu0
  %v109 = vld [vmem:[%s17] sm:$0x3]
  %vm110 = vcmask 15360
  %v112 = vsel %vm110, %v107, 0
  %vm114 = vcmask 1041408
  %v116 = vsel %vm114, %v109, 0
  %118 = vmatpush.msra.mxu0 0.0
  %119 = vmatpush.msra.mxu0 0.0
  %120 = vmatpush.msra.mxu0 0.0
  %121 = vmatpush.msra.mxu0 0.0
  %122 = vmatpush.msra.mxu0 0.0
  %123 = vmatpush.msra.mxu0 0.0
  %124 = vmatpush.msra.mxu0 0.0
  %125 = vmatpush.msra.mxu0 0.0
  %126 = vmatpush.msra.mxu0 0.0
  %127 = vmatpush.msra.mxu0 0.0
  %128 = vmatpush.msra.mxu0 0.0
  %129 = vmatpush.msra.mxu0 0.0
  %130 = vmatpush.msra.mxu0 0.0
  %131 = vmatpush.msra.mxu0 0.0
  %132 = vmatpush.msra.mxu0 0.0
  %133 = vmatpush.msra.mxu0 %v116
  %134 = vmatmul.f32.gmra.mxu0 %v112
  %v135 = vpop.f32.mrf.mxu0
  %v136 = vadd.f32 0.0, %v135
  %137 = vdwg.mxu0
  %v138 = vadd.f32 %v76, %v136
  %v139 = vld [vmem:[%s15] sm:$0xff]
  %v140 = vld [vmem:[%s15 + $0x8] sm:$0xff]
  %v141 = vld [vmem:[%s15 + $0x10] sm:$0xff]
  %v142 = vld [vmem:[%s15 + $0x18] sm:$0xff]
  %v143 = vld [vmem:[%s15 + $0x20] sm:$0xff]
  %v144 = vld [vmem:[%s15 + $0x28] sm:$0xff]
  %v145 = vld [vmem:[%s15 + $0x30] sm:$0xff]
  %v146 = vld [vmem:[%s15 + $0x38] sm:$0xff]
  %vm147 = vcmask 523264
  %v149 = vsel %vm147, %v138, 0
  %151 = vmatpush.msra.mxu0 0.0
  %152 = vmatpush.msra.mxu0 0.0
  %153 = vmatpush.msra.mxu0 0.0
  %154 = vmatpush.msra.mxu0 0.0
  %155 = vmatpush.msra.mxu0 0.0
  %156 = vmatpush.msra.mxu0 0.0
  %157 = vmatpush.msra.mxu0 0.0
  %158 = vmatpush.msra.mxu0 0.0
  %159 = vmatpush.msra.mxu0 %v146
  %160 = vmatpush.msra.mxu0 %v145
  %161 = vmatpush.msra.mxu0 %v144
  %162 = vmatpush.msra.mxu0 %v143
  %163 = vmatpush.msra.mxu0 %v142
  %164 = vmatpush.msra.mxu0 %v141
  %165 = vmatpush.msra.mxu0 %v140
  %166 = vmatpush.msra.mxu0 %v139
  %167 = vmatmul.f32.gmra.mxu0 %v149
  %v168 = vpop.f32.mrf.mxu0
  %v169 = vadd.f32 0.0, %v168
  %170 = vdwg.mxu0
  %s171 = scalar_lea.vmem %s15, 64
  %v172 = vld [vmem:[%s171] sm:$0xff]
  %v173 = vld [vmem:[%s171 + $0x8] sm:$0xff]
  %v174 = vld [vmem:[%s171 + $0x10] sm:$0xff]
  %v175 = vld [vmem:[%s171 + $0x18] sm:$0xff]
  %v176 = vld [vmem:[%s171 + $0x20] sm:$0xff]
  %v177 = vld [vmem:[%s171 + $0x28] sm:$0xff]
  %v178 = vld [vmem:[%s171 + $0x30] sm:$0xff]
  %v179 = vld [vmem:[%s171 + $0x38] sm:$0xff]
  %180 = vmatpush.msra.mxu0 0.0
  %181 = vmatpush.msra.mxu0 0.0
  %182 = vmatpush.msra.mxu0 0.0
  %183 = vmatpush.msra.mxu0 0.0
  %184 = vmatpush.msra.mxu0 0.0
  %185 = vmatpush.msra.mxu0 0.0
  %186 = vmatpush.msra.mxu0 0.0
  %187 = vmatpush.msra.mxu0 0.0
  %188 = vmatpush.msra.mxu0 %v179
  %189 = vmatpush.msra.mxu0 %v178
  %190 = vmatpush.msra.mxu0 %v177
  %191 = vmatpush.msra.mxu0 %v176
  %192 = vmatpush.msra.mxu0 %v175
  %193 = vmatpush.msra.mxu0 %v174
  %194 = vmatpush.msra.mxu0 %v173
  %195 = vmatpush.msra.mxu0 %v172
  %196 = vmatmul.f32.gmra.mxu0 %v149
  %v197 = vpop.f32.mrf.mxu0
  %v198 = vadd.f32 0.0, %v197
  %199 = vdwg.mxu0
  %v200 = vld [vmem:[%s5] sm:$0xff]
  %v201 = vld [vmem:[%s5 + $0x8] sm:$0x3]
  %s202 = scalar_lea.vmem %s5, 16
  %v203 = vld [vmem:[%s202] sm:$0xff]
  %v204 = vld [vmem:[%s202 + $0x8] sm:$0x3]
  %vm205 = vcmask 31744
  %v207 = vsel %vm205, %v203, 0
  %v210 = vsel %vm205, %v204, 0
  %vm212 = vcmask 1043456
  %v213 = vsel %vm212, %v138, 0
  %215 = vmatpush.msra.mxu0 0.0
  %216 = vmatpush.msra.mxu0 0.0
  %217 = vmatpush.msra.mxu0 0.0
  %218 = vmatpush.msra.mxu0 0.0
  %219 = vmatpush.msra.mxu0 0.0
  %220 = vmatpush.msra.mxu0 0.0
  %221 = vmatpush.msra.mxu0 0.0
  %222 = vmatpush.msra.mxu0 0.0
  %223 = vmatpush.msra.mxu0 0.0
  %224 = vmatpush.msra.mxu0 0.0
  %225 = vmatpush.msra.mxu0 0.0
  %226 = vmatpush.msra.mxu0 0.0
  %227 = vmatpush.msra.mxu0 0.0
  %228 = vmatpush.msra.mxu0 0.0
  %229 = vmatpush.msra.mxu0 0.0
  %230 = vmatpush.msra.mxu0 %v213
  %231 = vmatmul.f32.gmra.mxu0 %v207
  %v232 = vpop.f32.mrf.mxu0
  %v233 = vadd.f32 0.0, %v232
  %234 = vmatmul.f32.gmra.mxu0 %v210
  %v235 = vpop.f32.mrf.mxu0
  %v236 = vadd.f32 0.0, %v235
  %237 = vdwg.mxu0
  %v239 = vsel %vm205, %v200, 0
  %v242 = vsel %vm205, %v201, 0
  %v245 = vsel %vm212, %v169, 0
  %247 = vmatpush.msra.mxu0 0.0
  %248 = vmatpush.msra.mxu0 0.0
  %249 = vmatpush.msra.mxu0 0.0
  %250 = vmatpush.msra.mxu0 0.0
  %251 = vmatpush.msra.mxu0 0.0
  %252 = vmatpush.msra.mxu0 0.0
  %253 = vmatpush.msra.mxu0 0.0
  %254 = vmatpush.msra.mxu0 0.0
  %255 = vmatpush.msra.mxu0 0.0
  %256 = vmatpush.msra.mxu0 0.0
  %257 = vmatpush.msra.mxu0 0.0
  %258 = vmatpush.msra.mxu0 0.0
  %259 = vmatpush.msra.mxu0 0.0
  %260 = vmatpush.msra.mxu0 0.0
  %261 = vmatpush.msra.mxu0 0.0
  %262 = vmatpush.msra.mxu0 %v245
  %263 = vmatmul.f32.gmra.mxu0 %v239
  %v264 = vpop.f32.mrf.mxu0
  %v265 = vadd.f32 %v233, %v264
  %266 = vmatmul.f32.gmra.mxu0 %v242
  %v267 = vpop.f32.mrf.mxu0
  %v268 = vadd.f32 %v236, %v267
  %269 = vdwg.mxu0
  %s270 = scalar_lea.vmem %s5, 32
  %v271 = vld [vmem:[%s270] sm:$0xff]
  %v272 = vld [vmem:[%s270 + $0x8] sm:$0x3]
  %v274 = vsel %vm205, %v271, 0
  %v277 = vsel %vm205, %v272, 0
  %v280 = vsel %vm212, %v198, 0
  %282 = vmatpush.msra.mxu0 0.0
  %283 = vmatpush.msra.mxu0 0.0
  %284 = vmatpush.msra.mxu0 0.0
  %285 = vmatpush.msra.mxu0 0.0
  %286 = vmatpush.msra.mxu0 0.0
  %287 = vmatpush.msra.mxu0 0.0
  %288 = vmatpush.msra.mxu0 0.0
  %289 = vmatpush.msra.mxu0 0.0
  %290 = vmatpush.msra.mxu0 0.0
  %291 = vmatpush.msra.mxu0 0.0
  %292 = vmatpush.msra.mxu0 0.0
  %293 = vmatpush.msra.mxu0 0.0
  %294 = vmatpush.msra.mxu0 0.0
  %295 = vmatpush.msra.mxu0 0.0
  %296 = vmatpush.msra.mxu0 0.0
  %297 = vmatpush.msra.mxu0 %v280
  %298 = vmatmul.f32.gmra.mxu0 %v274
  %v299 = vpop.f32.mrf.mxu0
  %v300 = vadd.f32 0.0, %v299
  %301 = vmatmul.f32.gmra.mxu0 %v277
  %v302 = vpop.f32.mrf.mxu0
  %v303 = vadd.f32 0.0, %v302
  %304 = vdwg.mxu0
  %v305 = vadd.f32 %v265, %v300
  %v306 = vadd.f32 %v268, %v303
  %v307 = vxor.u32 %v306, 2147483648
  %v308 = vmul.f32 %v307, 1.442695
  %v309 = vpow.pop %v308
  %v310 = vadd.f32 %v309, 1.0
  %v311 = vrcp.pop %v310
  %v312 = vmul.f32 %v310, %v311
  %v313 = vsub.f32 1.0, %v312
  %v314 = vmul.f32 %v311, %v313
  %v315 = vadd.f32 %v311, %v314
  %vm316 = vweird.f32 %v310
  %vm317 = vweird.f32 %v311
  %vm318 = vmor %vm316, %vm317
  %v319 = vsel %vm318, %v311, %v315
  %v320 = vand.u32 2147483647, %v310
  %vm321 = vcmp.eq.f32.partialorder %v320, 8.507059e+37
  %v322 = vand.u32 %v310, 2147483648
  %v323 = vor.u32 1.1754944e-38, %v322
  %v324 = vsel %vm321, %v323, %v319
  %v325 = vmul.f32 1.0, %v324
  %v326 = vmul.f32 %v306, %v325
  %v327 = vld [vmem:[%s1] sm:$0x3]
  %v328 = vld [vmem:[%s16] sm:$0xff]
  %v329 = vld [vmem:[%s16 + $0x8] sm:$0xff]
  %v330 = vld [vmem:[%s16 + $0x10] sm:$0x3]
  %vm331 = vcmask 146432
  %v333 = vsel %vm331, %v327, 0
  %v336 = vsel %vm114, %v330, 0
  %338 = vmatpush.msra.mxu0 0.0
  %339 = vmatpush.msra.mxu0 0.0
  %340 = vmatpush.msra.mxu0 0.0
  %341 = vmatpush.msra.mxu0 0.0
  %342 = vmatpush.msra.mxu0 0.0
  %343 = vmatpush.msra.mxu0 0.0
  %344 = vmatpush.msra.mxu0 0.0
  %345 = vmatpush.msra.mxu0 0.0
  %346 = vmatpush.msra.mxu0 0.0
  %347 = vmatpush.msra.mxu0 0.0
  %348 = vmatpush.msra.mxu0 0.0
  %349 = vmatpush.msra.mxu0 0.0
  %350 = vmatpush.msra.mxu0 0.0
  %351 = vmatpush.msra.mxu0 %v336
  %352 = vmatpush.msra.mxu0 %v329
  %353 = vmatpush.msra.mxu0 %v328
  %354 = vmatmul.f32.gmra.mxu0 %v333
  %v355 = vpop.f32.mrf.mxu0
  %v356 = vadd.f32 0.0, %v355
  %357 = vdwg.mxu0
  %s358 = scalar_lea.vmem %s16, 24
  %v359 = vld [vmem:[%s358] sm:$0xff]
  %v360 = vld [vmem:[%s358 + $0x8] sm:$0xff]
  %v361 = vld [vmem:[%s358 + $0x10] sm:$0x3]
  %v363 = vsel %vm114, %v361, 0
  %365 = vmatpush.msra.mxu0 0.0
  %366 = vmatpush.msra.mxu0 0.0
  %367 = vmatpush.msra.mxu0 0.0
  %368 = vmatpush.msra.mxu0 0.0
  %369 = vmatpush.msra.mxu0 0.0
  %370 = vmatpush.msra.mxu0 0.0
  %371 = vmatpush.msra.mxu0 0.0
  %372 = vmatpush.msra.mxu0 0.0
  %373 = vmatpush.msra.mxu0 0.0
  %374 = vmatpush.msra.mxu0 0.0
  %375 = vmatpush.msra.mxu0 0.0
  %376 = vmatpush.msra.mxu0 0.0
  %377 = vmatpush.msra.mxu0 0.0
  %378 = vmatpush.msra.mxu0 %v363
  %379 = vmatpush.msra.mxu0 %v360
  %380 = vmatpush.msra.mxu0 %v359
  %381 = vmatmul.f32.gmra.mxu0 %v333
  %v382 = vpop.f32.mrf.mxu0
  %v383 = vadd.f32 0.0, %v382
  %384 = vdwg.mxu0
  %v385 = vld [vmem:[%s6] sm:$0xff]
  %s386 = scalar_lea.vmem %s6, 8
  %v387 = vld [vmem:[%s386] sm:$0xff]
  %v389 = vsel %vm110, %v387, 0
  %v391 = vsel %vm114, %v327, 0
  %393 = vmatpush.msra.mxu0 0.0
  %394 = vmatpush.msra.mxu0 0.0
  %395 = vmatpush.msra.mxu0 0.0
  %396 = vmatpush.msra.mxu0 0.0
  %397 = vmatpush.msra.mxu0 0.0
  %398 = vmatpush.msra.mxu0 0.0
  %399 = vmatpush.msra.mxu0 0.0
  %400 = vmatpush.msra.mxu0 0.0
  %401 = vmatpush.msra.mxu0 0.0
  %402 = vmatpush.msra.mxu0 0.0
  %403 = vmatpush.msra.mxu0 0.0
  %404 = vmatpush.msra.mxu0 0.0
  %405 = vmatpush.msra.mxu0 0.0
  %406 = vmatpush.msra.mxu0 0.0
  %407 = vmatpush.msra.mxu0 0.0
  %408 = vmatpush.msra.mxu0 %v391
  %409 = vmatmul.f32.gmra.mxu0 %v389
  %v410 = vpop.f32.mrf.mxu0
  %v411 = vadd.f32 0.0, %v410
  %412 = vdwg.mxu0
  %v414 = vsel %vm110, %v385, 0
  %v417 = vsel %vm114, %v356, 0
  %419 = vmatpush.msra.mxu0 0.0
  %420 = vmatpush.msra.mxu0 0.0
  %421 = vmatpush.msra.mxu0 0.0
  %422 = vmatpush.msra.mxu0 0.0
  %423 = vmatpush.msra.mxu0 0.0
  %424 = vmatpush.msra.mxu0 0.0
  %425 = vmatpush.msra.mxu0 0.0
  %426 = vmatpush.msra.mxu0 0.0
  %427 = vmatpush.msra.mxu0 0.0
  %428 = vmatpush.msra.mxu0 0.0
  %429 = vmatpush.msra.mxu0 0.0
  %430 = vmatpush.msra.mxu0 0.0
  %431 = vmatpush.msra.mxu0 0.0
  %432 = vmatpush.msra.mxu0 0.0
  %433 = vmatpush.msra.mxu0 0.0
  %434 = vmatpush.msra.mxu0 %v417
  %435 = vmatmul.f32.gmra.mxu0 %v414
  %v436 = vpop.f32.mrf.mxu0
  %v437 = vadd.f32 %v411, %v436
  %438 = vdwg.mxu0
  %s439 = scalar_lea.vmem %s6, 16
  %v440 = vld [vmem:[%s439] sm:$0xff]
  %v442 = vsel %vm110, %v440, 0
  %v445 = vsel %vm114, %v383, 0
  %447 = vmatpush.msra.mxu0 0.0
  %448 = vmatpush.msra.mxu0 0.0
  %449 = vmatpush.msra.mxu0 0.0
  %450 = vmatpush.msra.mxu0 0.0
  %451 = vmatpush.msra.mxu0 0.0
  %452 = vmatpush.msra.mxu0 0.0
  %453 = vmatpush.msra.mxu0 0.0
  %454 = vmatpush.msra.mxu0 0.0
  %455 = vmatpush.msra.mxu0 0.0
  %456 = vmatpush.msra.mxu0 0.0
  %457 = vmatpush.msra.mxu0 0.0
  %458 = vmatpush.msra.mxu0 0.0
  %459 = vmatpush.msra.mxu0 0.0
  %460 = vmatpush.msra.mxu0 0.0
  %461 = vmatpush.msra.mxu0 0.0
  %462 = vmatpush.msra.mxu0 %v445
  %463 = vmatmul.f32.gmra.mxu0 %v442
  %v464 = vpop.f32.mrf.mxu0
  %v465 = vadd.f32 0.0, %v464
  %466 = vdwg.mxu0
  %v467 = vadd.f32 %v437, %v465
  %v468 = vld [vmem:[%s7] sm:$0xff]
  %470 = vset.pattern.permute.xlu0 0
  %471 = vperm.xlu0 %470, %v468
  %v472 = vpop.permute.xlu0 %471
  %v474 = vadd.f32 %v467, %v472
  %v475 = vxor.u32 %v474, 2147483648
  %v476 = vmul.f32 %v475, 1.442695
  %v477 = vpow.pop %v476
  %v478 = vadd.f32 %v477, 1.0
  %v479 = vrcp.pop %v478
  %v480 = vmul.f32 %v478, %v479
  %v481 = vsub.f32 1.0, %v480
  %v482 = vmul.f32 %v479, %v481
  %v483 = vadd.f32 %v479, %v482
  %vm484 = vweird.f32 %v478
  %vm485 = vweird.f32 %v479
  %vm486 = vmor %vm484, %vm485
  %v487 = vsel %vm486, %v479, %v483
  %v488 = vand.u32 2147483647, %v478
  %vm489 = vcmp.eq.f32.partialorder %v488, 8.507059e+37
  %v490 = vand.u32 %v478, 2147483648
  %v491 = vor.u32 1.1754944e-38, %v490
  %v492 = vsel %vm489, %v491, %v487
  %v493 = vmul.f32 1.0, %v492
  %v494 = vmul.f32 %v474, %v493
  %v496 = vsel %vm331, %v494, 0
  %498 = vmatpush.msra.mxu0 0.0
  %499 = vmatpush.msra.mxu0 0.0
  %500 = vmatpush.msra.mxu0 0.0
  %501 = vmatpush.msra.mxu0 0.0
  %502 = vmatpush.msra.mxu0 0.0
  %503 = vmatpush.msra.mxu0 0.0
  %504 = vmatpush.msra.mxu0 0.0
  %505 = vmatpush.msra.mxu0 0.0
  %506 = vmatpush.msra.mxu0 0.0
  %507 = vmatpush.msra.mxu0 0.0
  %508 = vmatpush.msra.mxu0 0.0
  %509 = vmatpush.msra.mxu0 0.0
  %510 = vmatpush.msra.mxu0 0.0
  %511 = vmatpush.msra.mxu0 %v336
  %512 = vmatpush.msra.mxu0 %v329
  %513 = vmatpush.msra.mxu0 %v328
  %514 = vmatmul.f32.gmra.mxu0 %v496
  %v515 = vpop.f32.mrf.mxu0
  %v516 = vadd.f32 0.0, %v515
  %517 = vdwg.mxu0
  %518 = vmatpush.msra.mxu0 0.0
  %519 = vmatpush.msra.mxu0 0.0
  %520 = vmatpush.msra.mxu0 0.0
  %521 = vmatpush.msra.mxu0 0.0
  %522 = vmatpush.msra.mxu0 0.0
  %523 = vmatpush.msra.mxu0 0.0
  %524 = vmatpush.msra.mxu0 0.0
  %525 = vmatpush.msra.mxu0 0.0
  %526 = vmatpush.msra.mxu0 0.0
  %527 = vmatpush.msra.mxu0 0.0
  %528 = vmatpush.msra.mxu0 0.0
  %529 = vmatpush.msra.mxu0 0.0
  %530 = vmatpush.msra.mxu0 0.0
  %531 = vmatpush.msra.mxu0 %v363
  %532 = vmatpush.msra.mxu0 %v360
  %533 = vmatpush.msra.mxu0 %v359
  %534 = vmatmul.f32.gmra.mxu0 %v496
  %v535 = vpop.f32.mrf.mxu0
  %v536 = vadd.f32 0.0, %v535
  %537 = vdwg.mxu0
  %v538 = vld [vmem:[%s8] sm:$0xff]
  %s539 = scalar_lea.vmem %s8, 8
  %v540 = vld [vmem:[%s539] sm:$0xff]
  %v542 = vsel %vm85, %v540, 0
  %544 = vmatpush.msra.mxu0 0.0
  %545 = vmatpush.msra.mxu0 0.0
  %546 = vmatpush.msra.mxu0 0.0
  %547 = vmatpush.msra.mxu0 0.0
  %548 = vmatpush.msra.mxu0 0.0
  %549 = vmatpush.msra.mxu0 0.0
  %550 = vmatpush.msra.mxu0 0.0
  %551 = vmatpush.msra.mxu0 0.0
  %552 = vmatpush.msra.mxu0 0.0
  %553 = vmatpush.msra.mxu0 0.0
  %554 = vmatpush.msra.mxu0 0.0
  %555 = vmatpush.msra.mxu0 0.0
  %556 = vmatpush.msra.mxu0 0.0
  %557 = vmatpush.msra.mxu0 0.0
  %558 = vmatpush.msra.mxu0 0.0
  %559 = vmatpush.msra.mxu0 %v494
  %560 = vmatmul.f32.gmra.mxu0 %v542
  %v561 = vpop.f32.mrf.mxu0
  %v562 = vadd.f32 0.0, %v561
  %563 = vdwg.mxu0
  %v565 = vsel %vm85, %v538, 0
  %567 = vmatpush.msra.mxu0 0.0
  %568 = vmatpush.msra.mxu0 0.0
  %569 = vmatpush.msra.mxu0 0.0
  %570 = vmatpush.msra.mxu0 0.0
  %571 = vmatpush.msra.mxu0 0.0
  %572 = vmatpush.msra.mxu0 0.0
  %573 = vmatpush.msra.mxu0 0.0
  %574 = vmatpush.msra.mxu0 0.0
  %575 = vmatpush.msra.mxu0 0.0
  %576 = vmatpush.msra.mxu0 0.0
  %577 = vmatpush.msra.mxu0 0.0
  %578 = vmatpush.msra.mxu0 0.0
  %579 = vmatpush.msra.mxu0 0.0
  %580 = vmatpush.msra.mxu0 0.0
  %581 = vmatpush.msra.mxu0 0.0
  %582 = vmatpush.msra.mxu0 %v516
  %583 = vmatmul.f32.gmra.mxu0 %v565
  %v584 = vpop.f32.mrf.mxu0
  %v585 = vadd.f32 %v562, %v584
  %586 = vdwg.mxu0
  %s587 = scalar_lea.vmem %s8, 16
  %v588 = vld [vmem:[%s587] sm:$0xff]
  %v590 = vsel %vm85, %v588, 0
  %592 = vmatpush.msra.mxu0 0.0
  %593 = vmatpush.msra.mxu0 0.0
  %594 = vmatpush.msra.mxu0 0.0
  %595 = vmatpush.msra.mxu0 0.0
  %596 = vmatpush.msra.mxu0 0.0
  %597 = vmatpush.msra.mxu0 0.0
  %598 = vmatpush.msra.mxu0 0.0
  %599 = vmatpush.msra.mxu0 0.0
  %600 = vmatpush.msra.mxu0 0.0
  %601 = vmatpush.msra.mxu0 0.0
  %602 = vmatpush.msra.mxu0 0.0
  %603 = vmatpush.msra.mxu0 0.0
  %604 = vmatpush.msra.mxu0 0.0
  %605 = vmatpush.msra.mxu0 0.0
  %606 = vmatpush.msra.mxu0 0.0
  %607 = vmatpush.msra.mxu0 %v536
  %608 = vmatmul.f32.gmra.mxu0 %v590
  %v609 = vpop.f32.mrf.mxu0
  %v610 = vadd.f32 0.0, %v609
  %611 = vdwg.mxu0
  %v612 = vadd.f32 %v585, %v610
  %v613 = vld [vmem:[%s9] sm:$0xff]
  %615 = vset.pattern.permute.xlu0 0
  %616 = vperm.xlu0 %615, %v613
  %v617 = vpop.permute.xlu0 %616
  %v619 = vadd.f32 %v612, %v617
  %v620 = vld [vmem:[%s18] sm:$0xff]
  %v621 = vld [vmem:[%s18 + $0x8] sm:$0xff]
  %v622 = vld [vmem:[%s18 + $0x10] sm:$0xff]
  %v623 = vld [vmem:[%s18 + $0x18] sm:$0xff]
  %v624 = vld [vmem:[%s18 + $0x20] sm:$0x3]
  %v625 = vld [vmem:[%s18 + $0x28] sm:$0x3]
  %v627 = vsel %vm331, %v619, 0
  %v630 = vsel %vm114, %v624, 0
  %v633 = vsel %vm114, %v625, 0
  %635 = vmatpush.msra.mxu0 0.0
  %636 = vmatpush.msra.mxu0 0.0
  %637 = vmatpush.msra.mxu0 0.0
  %638 = vmatpush.msra.mxu0 0.0
  %639 = vmatpush.msra.mxu0 0.0
  %640 = vmatpush.msra.mxu0 0.0
  %641 = vmatpush.msra.mxu0 0.0
  %642 = vmatpush.msra.mxu0 0.0
  %643 = vmatpush.msra.mxu0 0.0
  %644 = vmatpush.msra.mxu0 0.0
  %645 = vmatpush.msra.mxu0 0.0
  %646 = vmatpush.msra.mxu0 0.0
  %647 = vmatpush.msra.mxu0 0.0
  %648 = vmatpush.msra.mxu0 %v630
  %649 = vmatpush.msra.mxu0 %v622
  %650 = vmatpush.msra.mxu0 %v620
  %651 = vmatmul.f32.gmra.mxu0 %v627
  %v652 = vpop.f32.mrf.mxu0
  %v653 = vadd.f32 0.0, %v652
  %654 = vdwg.mxu0
  %655 = vmatpush.msra.mxu0 0.0
  %656 = vmatpush.msra.mxu0 0.0
  %657 = vmatpush.msra.mxu0 0.0
  %658 = vmatpush.msra.mxu0 0.0
  %659 = vmatpush.msra.mxu0 0.0
  %660 = vmatpush.msra.mxu0 0.0
  %661 = vmatpush.msra.mxu0 0.0
  %662 = vmatpush.msra.mxu0 0.0
  %663 = vmatpush.msra.mxu0 0.0
  %664 = vmatpush.msra.mxu0 0.0
  %665 = vmatpush.msra.mxu0 0.0
  %666 = vmatpush.msra.mxu0 0.0
  %667 = vmatpush.msra.mxu0 0.0
  %668 = vmatpush.msra.mxu0 %v633
  %669 = vmatpush.msra.mxu0 %v623
  %670 = vmatpush.msra.mxu0 %v621
  %671 = vmatmul.f32.gmra.mxu0 %v627
  %v672 = vpop.f32.mrf.mxu0
  %v673 = vadd.f32 0.0, %v672
  %674 = vdwg.mxu0
  %v675 = vrot.slane %v619, 4
  %v676 = vsel %vm331, %v675, 0
  %678 = vmatpush.msra.mxu0 0.0
  %679 = vmatpush.msra.mxu0 0.0
  %680 = vmatpush.msra.mxu0 0.0
  %681 = vmatpush.msra.mxu0 0.0
  %682 = vmatpush.msra.mxu0 0.0
  %683 = vmatpush.msra.mxu0 0.0
  %684 = vmatpush.msra.mxu0 0.0
  %685 = vmatpush.msra.mxu0 0.0
  %686 = vmatpush.msra.mxu0 0.0
  %687 = vmatpush.msra.mxu0 0.0
  %688 = vmatpush.msra.mxu0 0.0
  %689 = vmatpush.msra.mxu0 0.0
  %690 = vmatpush.msra.mxu0 0.0
  %691 = vmatpush.msra.mxu0 %v630
  %692 = vmatpush.msra.mxu0 %v622
  %693 = vmatpush.msra.mxu0 %v620
  %694 = vmatmul.f32.gmra.mxu0 %v676
  %v695 = vpop.f32.mrf.mxu0
  %v696 = vadd.f32 0.0, %v695
  %697 = vdwg.mxu0
  %698 = vmatpush.msra.mxu0 0.0
  %699 = vmatpush.msra.mxu0 0.0
  %700 = vmatpush.msra.mxu0 0.0
  %701 = vmatpush.msra.mxu0 0.0
  %702 = vmatpush.msra.mxu0 0.0
  %703 = vmatpush.msra.mxu0 0.0
  %704 = vmatpush.msra.mxu0 0.0
  %705 = vmatpush.msra.mxu0 0.0
  %706 = vmatpush.msra.mxu0 0.0
  %707 = vmatpush.msra.mxu0 0.0
  %708 = vmatpush.msra.mxu0 0.0
  %709 = vmatpush.msra.mxu0 0.0
  %710 = vmatpush.msra.mxu0 0.0
  %711 = vmatpush.msra.mxu0 %v633
  %712 = vmatpush.msra.mxu0 %v623
  %713 = vmatpush.msra.mxu0 %v621
  %714 = vmatmul.f32.gmra.mxu0 %v676
  %v715 = vpop.f32.mrf.mxu0
  %v716 = vadd.f32 0.0, %v715
  %717 = vdwg.mxu0
  %v718 = vld [vmem:[%s19] sm:$0xff]
  %v719 = vld [vmem:[%s19 + $0x8] sm:$0xff]
  %v720 = vld [vmem:[%s19 + $0x10] sm:$0xff]
  %v721 = vld [vmem:[%s19 + $0x18] sm:$0xff]
  %v722 = vld [vmem:[%s19 + $0x20] sm:$0xff]
  %v723 = vld [vmem:[%s19 + $0x28] sm:$0xff]
  %v724 = vld [vmem:[%s19 + $0x30] sm:$0xff]
  %v725 = vld [vmem:[%s19 + $0x38] sm:$0xff]
  %v726 = vld [vmem:[%s19 + $0x40] sm:$0xff]
  %v727 = vld [vmem:[%s19 + $0x48] sm:$0xff]
  %v728 = vld [vmem:[%s19 + $0x50] sm:$0xff]
  %v729 = vld [vmem:[%s19 + $0x58] sm:$0xff]
  %v730 = vld [vmem:[%s19 + $0x60] sm:$0xff]
  %v731 = vld [vmem:[%s19 + $0x68] sm:$0xff]
  %v732 = vld [vmem:[%s19 + $0x70] sm:$0xff]
  %v733 = vld [vmem:[%s19 + $0x78] sm:$0xff]
  %v735 = vsel %vm147, %v326, 0
  %737 = vmatpush.msra.mxu0 0.0
  %738 = vmatpush.msra.mxu0 0.0
  %739 = vmatpush.msra.mxu0 0.0
  %740 = vmatpush.msra.mxu0 0.0
  %741 = vmatpush.msra.mxu0 0.0
  %742 = vmatpush.msra.mxu0 0.0
  %743 = vmatpush.msra.mxu0 0.0
  %744 = vmatpush.msra.mxu0 0.0
  %745 = vmatpush.msra.mxu0 %v732
  %746 = vmatpush.msra.mxu0 %v730
  %747 = vmatpush.msra.mxu0 %v728
  %748 = vmatpush.msra.mxu0 %v726
  %749 = vmatpush.msra.mxu0 %v724
  %750 = vmatpush.msra.mxu0 %v722
  %751 = vmatpush.msra.mxu0 %v720
  %752 = vmatpush.msra.mxu0 %v718
  %753 = vmatmul.f32.gmra.mxu0 %v735
  %v754 = vpop.f32.mrf.mxu0
  %v755 = vadd.f32 0.0, %v754
  %756 = vdwg.mxu0
  %757 = vmatpush.msra.mxu0 0.0
  %758 = vmatpush.msra.mxu0 0.0
  %759 = vmatpush.msra.mxu0 0.0
  %760 = vmatpush.msra.mxu0 0.0
  %761 = vmatpush.msra.mxu0 0.0
  %762 = vmatpush.msra.mxu0 0.0
  %763 = vmatpush.msra.mxu0 0.0
  %764 = vmatpush.msra.mxu0 0.0
  %765 = vmatpush.msra.mxu0 %v733
  %766 = vmatpush.msra.mxu0 %v731
  %767 = vmatpush.msra.mxu0 %v729
  %768 = vmatpush.msra.mxu0 %v727
  %769 = vmatpush.msra.mxu0 %v725
  %770 = vmatpush.msra.mxu0 %v723
  %771 = vmatpush.msra.mxu0 %v721
  %772 = vmatpush.msra.mxu0 %v719
  %773 = vmatmul.f32.gmra.mxu0 %v735
  %v774 = vpop.f32.mrf.mxu0
  %v775 = vadd.f32 0.0, %v774
  %776 = vdwg.mxu0
  %v777 = vld [vmem:[%s20] sm:$0xff]
  %v778 = vld [vmem:[%s20 + $0x8] sm:$0xff]
  %v779 = vld [vmem:[%s20 + $0x10] sm:$0xff]
  %v780 = vld [vmem:[%s20 + $0x18] sm:$0xff]
  %v781 = vld [vmem:[%s20 + $0x20] sm:$0xff]
  %v782 = vld [vmem:[%s20 + $0x28] sm:$0xff]
  %v783 = vld [vmem:[%s20 + $0x30] sm:$0xff]
  %v784 = vld [vmem:[%s20 + $0x38] sm:$0xff]
  %v785 = vld [vmem:[%s20 + $0x40] sm:$0xff]
  %v786 = vld [vmem:[%s20 + $0x48] sm:$0xff]
  %v787 = vld [vmem:[%s20 + $0x50] sm:$0xff]
  %v788 = vld [vmem:[%s20 + $0x58] sm:$0xff]
  %v789 = vld [vmem:[%s20 + $0x60] sm:$0xff]
  %v790 = vld [vmem:[%s20 + $0x68] sm:$0xff]
  %v791 = vld [vmem:[%s20 + $0x70] sm:$0xff]
  %v792 = vld [vmem:[%s20 + $0x78] sm:$0xff]
  %793 = vmatpush.msra.mxu0 0.0
  %794 = vmatpush.msra.mxu0 0.0
  %795 = vmatpush.msra.mxu0 0.0
  %796 = vmatpush.msra.mxu0 0.0
  %797 = vmatpush.msra.mxu0 0.0
  %798 = vmatpush.msra.mxu0 0.0
  %799 = vmatpush.msra.mxu0 0.0
  %800 = vmatpush.msra.mxu0 0.0
  %801 = vmatpush.msra.mxu0 %v791
  %802 = vmatpush.msra.mxu0 %v789
  %803 = vmatpush.msra.mxu0 %v787
  %804 = vmatpush.msra.mxu0 %v785
  %805 = vmatpush.msra.mxu0 %v783
  %806 = vmatpush.msra.mxu0 %v781
  %807 = vmatpush.msra.mxu0 %v779
  %808 = vmatpush.msra.mxu0 %v777
  %809 = vmatmul.f32.gmra.mxu0 %v735
  %v810 = vpop.f32.mrf.mxu0
  %v811 = vadd.f32 0.0, %v810
  %812 = vdwg.mxu0
  %813 = vmatpush.msra.mxu0 0.0
  %814 = vmatpush.msra.mxu0 0.0
  %815 = vmatpush.msra.mxu0 0.0
  %816 = vmatpush.msra.mxu0 0.0
  %817 = vmatpush.msra.mxu0 0.0
  %818 = vmatpush.msra.mxu0 0.0
  %819 = vmatpush.msra.mxu0 0.0
  %820 = vmatpush.msra.mxu0 0.0
  %821 = vmatpush.msra.mxu0 %v792
  %822 = vmatpush.msra.mxu0 %v790
  %823 = vmatpush.msra.mxu0 %v788
  %824 = vmatpush.msra.mxu0 %v786
  %825 = vmatpush.msra.mxu0 %v784
  %826 = vmatpush.msra.mxu0 %v782
  %827 = vmatpush.msra.mxu0 %v780
  %828 = vmatpush.msra.mxu0 %v778
  %829 = vmatmul.f32.gmra.mxu0 %v735
  %v830 = vpop.f32.mrf.mxu0
  %v831 = vadd.f32 0.0, %v830
  %832 = vdwg.mxu0
  %v833 = vadd.f32 %v653, 1.0
  %v834 = vadd.f32 %v673, 1.0
  %v835 = vmul.f32 %v755, %v833
  %v836 = vmul.f32 %v775, %v834
  %v837 = vadd.f32 %v835, %v696
  %v838 = vadd.f32 %v836, %v716
  %v839 = vmax.f32 %v837, 0.0
  %v840 = vmax.f32 %v838, 0.0
  %v843 = vrot.slane %v833, 2
  %v844 = vrot.slane %v834, 2
  %v847 = vmul.f32 %v811, %v843
  %v848 = vmul.f32 %v831, %v844
  %v851 = vrot.slane %v696, 2
  %v852 = vrot.slane %v716, 2
  %v855 = vadd.f32 %v847, %v851
  %v856 = vadd.f32 %v848, %v852
  %v857 = vmax.f32 %v855, 0.0
  %v858 = vmax.f32 %v856, 0.0
  %v859 = vld [vmem:[%s10] sm:$0xf]
  %861 = vrot.lane.b32.xlu0 %v859, 126
  %v862 = vpop.permute.xlu0 %861
  %v863 = vsel %vm110, %v862, 0
  %v866 = vsel %vm114, %v857, 0
  %v869 = vsel %vm114, %v858, 0
  %871 = vmatpush.msra.mxu0 0.0
  %872 = vmatpush.msra.mxu0 0.0
  %873 = vmatpush.msra.mxu0 0.0
  %874 = vmatpush.msra.mxu0 0.0
  %875 = vmatpush.msra.mxu0 0.0
  %876 = vmatpush.msra.mxu0 0.0
  %877 = vmatpush.msra.mxu0 0.0
  %878 = vmatpush.msra.mxu0 0.0
  %879 = vmatpush.msra.mxu0 0.0
  %880 = vmatpush.msra.mxu0 0.0
  %881 = vmatpush.msra.mxu0 0.0
  %882 = vmatpush.msra.mxu0 0.0
  %883 = vmatpush.msra.mxu0 0.0
  %884 = vmatpush.msra.mxu0 0.0
  %885 = vmatpush.msra.mxu0 0.0
  %886 = vmatpush.msra.mxu0 %v866
  %887 = vmatmul.f32.gmra.mxu0 %v863
  %v888 = vpop.f32.mrf.mxu0
  %v889 = vadd.f32 0.0, %v888
  %890 = vdwg.mxu0
  %891 = vmatpush.msra.mxu0 0.0
  %892 = vmatpush.msra.mxu0 0.0
  %893 = vmatpush.msra.mxu0 0.0
  %894 = vmatpush.msra.mxu0 0.0
  %895 = vmatpush.msra.mxu0 0.0
  %896 = vmatpush.msra.mxu0 0.0
  %897 = vmatpush.msra.mxu0 0.0
  %898 = vmatpush.msra.mxu0 0.0
  %899 = vmatpush.msra.mxu0 0.0
  %900 = vmatpush.msra.mxu0 0.0
  %901 = vmatpush.msra.mxu0 0.0
  %902 = vmatpush.msra.mxu0 0.0
  %903 = vmatpush.msra.mxu0 0.0
  %904 = vmatpush.msra.mxu0 0.0
  %905 = vmatpush.msra.mxu0 0.0
  %906 = vmatpush.msra.mxu0 %v869
  %907 = vmatmul.f32.gmra.mxu0 %v863
  %v908 = vpop.f32.mrf.mxu0
  %v909 = vadd.f32 0.0, %v908
  %910 = vdwg.mxu0
  %v911 = vsel %vm110, %v859, 0
  %v914 = vsel %vm114, %v839, 0
  %v917 = vsel %vm114, %v840, 0
  %919 = vmatpush.msra.mxu0 0.0
  %920 = vmatpush.msra.mxu0 0.0
  %921 = vmatpush.msra.mxu0 0.0
  %922 = vmatpush.msra.mxu0 0.0
  %923 = vmatpush.msra.mxu0 0.0
  %924 = vmatpush.msra.mxu0 0.0
  %925 = vmatpush.msra.mxu0 0.0
  %926 = vmatpush.msra.mxu0 0.0
  %927 = vmatpush.msra.mxu0 0.0
  %928 = vmatpush.msra.mxu0 0.0
  %929 = vmatpush.msra.mxu0 0.0
  %930 = vmatpush.msra.mxu0 0.0
  %931 = vmatpush.msra.mxu0 0.0
  %932 = vmatpush.msra.mxu0 0.0
  %933 = vmatpush.msra.mxu0 0.0
  %934 = vmatpush.msra.mxu0 %v914
  %935 = vmatmul.f32.gmra.mxu0 %v911
  %v936 = vpop.f32.mrf.mxu0
  %v937 = vadd.f32 %v889, %v936
  %938 = vdwg.mxu0
  %939 = vmatpush.msra.mxu0 0.0
  %940 = vmatpush.msra.mxu0 0.0
  %941 = vmatpush.msra.mxu0 0.0
  %942 = vmatpush.msra.mxu0 0.0
  %943 = vmatpush.msra.mxu0 0.0
  %944 = vmatpush.msra.mxu0 0.0
  %945 = vmatpush.msra.mxu0 0.0
  %946 = vmatpush.msra.mxu0 0.0
  %947 = vmatpush.msra.mxu0 0.0
  %948 = vmatpush.msra.mxu0 0.0
  %949 = vmatpush.msra.mxu0 0.0
  %950 = vmatpush.msra.mxu0 0.0
  %951 = vmatpush.msra.mxu0 0.0
  %952 = vmatpush.msra.mxu0 0.0
  %953 = vmatpush.msra.mxu0 0.0
  %954 = vmatpush.msra.mxu0 %v917
  %955 = vmatmul.f32.gmra.mxu0 %v911
  %v956 = vpop.f32.mrf.mxu0
  %v957 = vadd.f32 %v909, %v956
  %958 = vdwg.mxu0
  %v959 = vrot.slane %v859, 2
  %960 = vrot.lane.b32.xlu0 %v959, 126
  %v961 = vpop.permute.xlu0 %960
  %v962 = vsel %vm110, %v961, 0
  %964 = vmatpush.msra.mxu0 0.0
  %965 = vmatpush.msra.mxu0 0.0
  %966 = vmatpush.msra.mxu0 0.0
  %967 = vmatpush.msra.mxu0 0.0
  %968 = vmatpush.msra.mxu0 0.0
  %969 = vmatpush.msra.mxu0 0.0
  %970 = vmatpush.msra.mxu0 0.0
  %971 = vmatpush.msra.mxu0 0.0
  %972 = vmatpush.msra.mxu0 0.0
  %973 = vmatpush.msra.mxu0 0.0
  %974 = vmatpush.msra.mxu0 0.0
  %975 = vmatpush.msra.mxu0 0.0
  %976 = vmatpush.msra.mxu0 0.0
  %977 = vmatpush.msra.mxu0 0.0
  %978 = vmatpush.msra.mxu0 0.0
  %979 = vmatpush.msra.mxu0 %v866
  %980 = vmatmul.f32.gmra.mxu0 %v962
  %v981 = vpop.f32.mrf.mxu0
  %v982 = vadd.f32 0.0, %v981
  %983 = vdwg.mxu0
  %984 = vmatpush.msra.mxu0 0.0
  %985 = vmatpush.msra.mxu0 0.0
  %986 = vmatpush.msra.mxu0 0.0
  %987 = vmatpush.msra.mxu0 0.0
  %988 = vmatpush.msra.mxu0 0.0
  %989 = vmatpush.msra.mxu0 0.0
  %990 = vmatpush.msra.mxu0 0.0
  %991 = vmatpush.msra.mxu0 0.0
  %992 = vmatpush.msra.mxu0 0.0
  %993 = vmatpush.msra.mxu0 0.0
  %994 = vmatpush.msra.mxu0 0.0
  %995 = vmatpush.msra.mxu0 0.0
  %996 = vmatpush.msra.mxu0 0.0
  %997 = vmatpush.msra.mxu0 0.0
  %998 = vmatpush.msra.mxu0 0.0
  %999 = vmatpush.msra.mxu0 %v869
  %1000 = vmatmul.f32.gmra.mxu0 %v962
  %v1001 = vpop.f32.mrf.mxu0
  %v1002 = vadd.f32 0.0, %v1001
  %1003 = vdwg.mxu0
  %v1004 = vsel %vm110, %v959, 0
  %1006 = vmatpush.msra.mxu0 0.0
  %1007 = vmatpush.msra.mxu0 0.0
  %1008 = vmatpush.msra.mxu0 0.0
  %1009 = vmatpush.msra.mxu0 0.0
  %1010 = vmatpush.msra.mxu0 0.0
  %1011 = vmatpush.msra.mxu0 0.0
  %1012 = vmatpush.msra.mxu0 0.0
  %1013 = vmatpush.msra.mxu0 0.0
  %1014 = vmatpush.msra.mxu0 0.0
  %1015 = vmatpush.msra.mxu0 0.0
  %1016 = vmatpush.msra.mxu0 0.0
  %1017 = vmatpush.msra.mxu0 0.0
  %1018 = vmatpush.msra.mxu0 0.0
  %1019 = vmatpush.msra.mxu0 0.0
  %1020 = vmatpush.msra.mxu0 0.0
  %1021 = vmatpush.msra.mxu0 %v914
  %1022 = vmatmul.f32.gmra.mxu0 %v1004
  %v1023 = vpop.f32.mrf.mxu0
  %v1024 = vadd.f32 %v982, %v1023
  %1025 = vdwg.mxu0
  %1026 = vmatpush.msra.mxu0 0.0
  %1027 = vmatpush.msra.mxu0 0.0
  %1028 = vmatpush.msra.mxu0 0.0
  %1029 = vmatpush.msra.mxu0 0.0
  %1030 = vmatpush.msra.mxu0 0.0
  %1031 = vmatpush.msra.mxu0 0.0
  %1032 = vmatpush.msra.mxu0 0.0
  %1033 = vmatpush.msra.mxu0 0.0
  %1034 = vmatpush.msra.mxu0 0.0
  %1035 = vmatpush.msra.mxu0 0.0
  %1036 = vmatpush.msra.mxu0 0.0
  %1037 = vmatpush.msra.mxu0 0.0
  %1038 = vmatpush.msra.mxu0 0.0
  %1039 = vmatpush.msra.mxu0 0.0
  %1040 = vmatpush.msra.mxu0 0.0
  %1041 = vmatpush.msra.mxu0 %v917
  %1042 = vmatmul.f32.gmra.mxu0 %v1004
  %v1043 = vpop.f32.mrf.mxu0
  %v1044 = vadd.f32 %v1002, %v1043
  %1045 = vdwg.mxu0
  %v1046 = vld [vmem:[%s21] sm:$0xff]
  %v1047 = vld [vmem:[%s21 + $0x8] sm:$0xff]
  %v1048 = vld [vmem:[%s21 + $0x10] sm:$0xff]
  %v1049 = vld [vmem:[%s21 + $0x18] sm:$0xff]
  %v1050 = vld [vmem:[%s21 + $0x20] sm:$0xff]
  %v1051 = vld [vmem:[%s21 + $0x28] sm:$0xff]
  %v1052 = vld [vmem:[%s21 + $0x30] sm:$0xff]
  %v1053 = vld [vmem:[%s21 + $0x38] sm:$0xff]
  %v1054 = vld [vmem:[%s21 + $0x40] sm:$0xff]
  %v1055 = vld [vmem:[%s21 + $0x48] sm:$0xff]
  %v1056 = vld [vmem:[%s21 + $0x50] sm:$0xff]
  %v1057 = vld [vmem:[%s21 + $0x58] sm:$0xff]
  %v1058 = vld [vmem:[%s21 + $0x60] sm:$0xff]
  %v1059 = vld [vmem:[%s21 + $0x68] sm:$0xff]
  %v1060 = vld [vmem:[%s21 + $0x70] sm:$0xff]
  %v1061 = vld [vmem:[%s21 + $0x78] sm:$0xff]
  %v1062 = vld [vmem:[%s21 + $0x80] sm:$0xff]
  %v1063 = vld [vmem:[%s21 + $0x88] sm:$0xff]
  %v1064 = vld [vmem:[%s21 + $0x90] sm:$0xff]
  %v1065 = vld [vmem:[%s21 + $0x98] sm:$0xff]
  %v1066 = vld [vmem:[%s21 + $0xa0] sm:$0x3]
  %v1067 = vld [vmem:[%s22] sm:$0xff]
  %v1068 = vld [vmem:[%s22 + $0x8] sm:$0xff]
  %v1069 = vld [vmem:[%s22 + $0x10] sm:$0xff]
  %v1070 = vld [vmem:[%s22 + $0x18] sm:$0xff]
  %v1071 = vld [vmem:[%s22 + $0x20] sm:$0xff]
  %v1072 = vld [vmem:[%s22 + $0x28] sm:$0xff]
  %v1073 = vld [vmem:[%s22 + $0x30] sm:$0xff]
  %v1074 = vld [vmem:[%s22 + $0x38] sm:$0xff]
  %v1075 = vld [vmem:[%s22 + $0x40] sm:$0xff]
  %v1076 = vld [vmem:[%s22 + $0x48] sm:$0xff]
  %v1077 = vld [vmem:[%s22 + $0x50] sm:$0xff]
  %v1078 = vld [vmem:[%s22 + $0x58] sm:$0xff]
  %v1079 = vld [vmem:[%s22 + $0x60] sm:$0xff]
  %v1080 = vld [vmem:[%s22 + $0x68] sm:$0xff]
  %v1081 = vld [vmem:[%s22 + $0x70] sm:$0xff]
  %v1082 = vld [vmem:[%s22 + $0x78] sm:$0xff]
  %v1083 = vld [vmem:[%s22 + $0x80] sm:$0xff]
  %v1084 = vld [vmem:[%s22 + $0x88] sm:$0xff]
  %v1085 = vld [vmem:[%s22 + $0x90] sm:$0xff]
  %v1086 = vld [vmem:[%s22 + $0x98] sm:$0xff]
  %v1087 = vld [vmem:[%s22 + $0xa0] sm:$0x3]
  %vm1088 = vcmask 277504
  %v1090 = vsel %vm1088, %v1044, 0
  %v1093 = vsel %vm114, %v1087, 0
  %1095 = vmatpush.msra.mxu0 %v1082
  %1096 = vmatpush.msra.mxu0 %v1081
  %1097 = vmatpush.msra.mxu0 %v1080
  %1098 = vmatpush.msra.mxu0 %v1079
  %1099 = vmatpush.msra.mxu0 %v1078
  %1100 = vmatpush.msra.mxu0 %v1077
  %1101 = vmatpush.msra.mxu0 %v1076
  %1102 = vmatpush.msra.mxu0 %v1075
  %1103 = vmatpush.msra.mxu0 %v1074
  %1104 = vmatpush.msra.mxu0 %v1073
  %1105 = vmatpush.msra.mxu0 %v1072
  %1106 = vmatpush.msra.mxu0 %v1071
  %1107 = vmatpush.msra.mxu0 %v1070
  %1108 = vmatpush.msra.mxu0 %v1069
  %1109 = vmatpush.msra.mxu0 %v1068
  %1110 = vmatpush.msra.mxu0 %v1067
  %1111 = vmatmul.f32.gmra.mxu0 %v1024
  %v1112 = vpop.f32.mrf.mxu0
  %v1113 = vadd.f32 0.0, %v1112
  %1114 = vdwg.mxu0
  %1115 = vmatpush.msra.mxu0 0.0
  %1116 = vmatpush.msra.mxu0 0.0
  %1117 = vmatpush.msra.mxu0 0.0
  %1118 = vmatpush.msra.mxu0 0.0
  %1119 = vmatpush.msra.mxu0 0.0
  %1120 = vmatpush.msra.mxu0 0.0
  %1121 = vmatpush.msra.mxu0 0.0
  %1122 = vmatpush.msra.mxu0 0.0
  %1123 = vmatpush.msra.mxu0 0.0
  %1124 = vmatpush.msra.mxu0 0.0
  %1125 = vmatpush.msra.mxu0 0.0
  %1126 = vmatpush.msra.mxu0 %v1093
  %1127 = vmatpush.msra.mxu0 %v1086
  %1128 = vmatpush.msra.mxu0 %v1085
  %1129 = vmatpush.msra.mxu0 %v1084
  %1130 = vmatpush.msra.mxu0 %v1083
  %1131 = vmatmul.f32.gmra.mxu0 %v1090
  %v1132 = vpop.f32.mrf.mxu0
  %v1133 = vadd.f32 %v1113, %v1132
  %1134 = vdwg.mxu0
  %v1136 = vsel %vm1088, %v957, 0
  %v1139 = vsel %vm114, %v1066, 0
  %1141 = vmatpush.msra.mxu0 %v1061
  %1142 = vmatpush.msra.mxu0 %v1060
  %1143 = vmatpush.msra.mxu0 %v1059
  %1144 = vmatpush.msra.mxu0 %v1058
  %1145 = vmatpush.msra.mxu0 %v1057
  %1146 = vmatpush.msra.mxu0 %v1056
  %1147 = vmatpush.msra.mxu0 %v1055
  %1148 = vmatpush.msra.mxu0 %v1054
  %1149 = vmatpush.msra.mxu0 %v1053
  %1150 = vmatpush.msra.mxu0 %v1052
  %1151 = vmatpush.msra.mxu0 %v1051
  %1152 = vmatpush.msra.mxu0 %v1050
  %1153 = vmatpush.msra.mxu0 %v1049
  %1154 = vmatpush.msra.mxu0 %v1048
  %1155 = vmatpush.msra.mxu0 %v1047
  %1156 = vmatpush.msra.mxu0 %v1046
  %1157 = vmatmul.f32.gmra.mxu0 %v937
  %v1158 = vpop.f32.mrf.mxu0
  %v1159 = vadd.f32 %v1133, %v1158
  %1160 = vdwg.mxu0
  %1161 = vmatpush.msra.mxu0 0.0
  %1162 = vmatpush.msra.mxu0 0.0
  %1163 = vmatpush.msra.mxu0 0.0
  %1164 = vmatpush.msra.mxu0 0.0
  %1165 = vmatpush.msra.mxu0 0.0
  %1166 = vmatpush.msra.mxu0 0.0
  %1167 = vmatpush.msra.mxu0 0.0
  %1168 = vmatpush.msra.mxu0 0.0
  %1169 = vmatpush.msra.mxu0 0.0
  %1170 = vmatpush.msra.mxu0 0.0
  %1171 = vmatpush.msra.mxu0 0.0
  %1172 = vmatpush.msra.mxu0 %v1139
  %1173 = vmatpush.msra.mxu0 %v1065
  %1174 = vmatpush.msra.mxu0 %v1064
  %1175 = vmatpush.msra.mxu0 %v1063
  %1176 = vmatpush.msra.mxu0 %v1062
  %1177 = vmatmul.f32.gmra.mxu0 %v1136
  %v1178 = vpop.f32.mrf.mxu0
  %v1179 = vadd.f32 %v1159, %v1178
  %1180 = vdwg.mxu0
  %v1181 = vld [vmem:[%s11] sm:$0xf]
  %v1182 = vadd.f32 %v326, %v1179
  %v1184 = vsel %vm110, %v1181, 0
  %v1187 = vsel %vm114, %v1182, 0
  %1189 = vmatpush.msra.mxu0 0.0
  %1190 = vmatpush.msra.mxu0 0.0
  %1191 = vmatpush.msra.mxu0 0.0
  %1192 = vmatpush.msra.mxu0 0.0
  %1193 = vmatpush.msra.mxu0 0.0
  %1194 = vmatpush.msra.mxu0 0.0
  %1195 = vmatpush.msra.mxu0 0.0
  %1196 = vmatpush.msra.mxu0 0.0
  %1197 = vmatpush.msra.mxu0 0.0
  %1198 = vmatpush.msra.mxu0 0.0
  %1199 = vmatpush.msra.mxu0 0.0
  %1200 = vmatpush.msra.mxu0 0.0
  %1201 = vmatpush.msra.mxu0 0.0
  %1202 = vmatpush.msra.mxu0 0.0
  %1203 = vmatpush.msra.mxu0 0.0
  %1204 = vmatpush.msra.mxu0 %v1187
  %1205 = vmatmul.f32.gmra.mxu0 %v1184
  %v1206 = vpop.f32.mrf.mxu0
  %v1207 = vadd.f32 0.0, %v1206
  %1208 = vdwg.mxu0
  %v1210 = vrot.slane %v1207, 4
  %v1212 = vadd.f32 %v305, %v1210
  %v1213 = vxor.u32 %v305, 2147483648
  %v1214 = vmul.f32 %v1213, 1.442695
  %v1215 = vpow.pop %v1214
  %v1216 = vadd.f32 %v1215, 1.0
  %v1217 = vrcp.pop %v1216
  %v1218 = vmul.f32 %v1216, %v1217
  %v1219 = vsub.f32 1.0, %v1218
  %v1220 = vmul.f32 %v1217, %v1219
  %v1221 = vadd.f32 %v1217, %v1220
  %vm1222 = vweird.f32 %v1216
  %vm1223 = vweird.f32 %v1217
  %vm1224 = vmor %vm1222, %vm1223
  %v1225 = vsel %vm1224, %v1217, %v1221
  %v1226 = vand.u32 2147483647, %v1216
  %vm1227 = vcmp.eq.f32.partialorder %v1226, 8.507059e+37
  %v1228 = vand.u32 %v1216, 2147483648
  %v1229 = vor.u32 1.1754944e-38, %v1228
  %v1230 = vsel %vm1227, %v1229, %v1225
  %v1231 = vmul.f32 1.0, %v1230
  %v1232 = vtanh.pop %v305
  %v1234 = vrot.slane %v1232, 2
  %v1236 = vmul.f32 %v1231, %v1234
  %v1237 = vxor.u32 %v1212, 2147483648
  %v1238 = vmul.f32 %v1237, 1.442695
  %v1239 = vpow.pop %v1238
  %v1240 = vadd.f32 %v1239, 1.0
  %v1241 = vrcp.pop %v1240
  %v1242 = vmul.f32 %v1240, %v1241
  %v1243 = vsub.f32 1.0, %v1242
  %v1244 = vmul.f32 %v1241, %v1243
  %v1245 = vadd.f32 %v1241, %v1244
  %vm1246 = vweird.f32 %v1240
  %vm1247 = vweird.f32 %v1241
  %vm1248 = vmor %vm1246, %vm1247
  %v1249 = vsel %vm1248, %v1241, %v1245
  %v1250 = vand.u32 2147483647, %v1240
  %vm1251 = vcmp.eq.f32.partialorder %v1250, 8.507059e+37
  %v1252 = vand.u32 %v1240, 2147483648
  %v1253 = vor.u32 1.1754944e-38, %v1252
  %v1254 = vsel %vm1251, %v1253, %v1249
  %v1255 = vmul.f32 1.0, %v1254
  %v1256 = vtanh.pop %v1212
  %v1258 = vrot.slane %v1256, 2
  %v1260 = vmul.f32 %v1255, %v1258
  %v1261 = vld [vmem:[%s12] sm:$0xff]
  %v1262 = vld [vmem:[%s13] sm:$0xff]
  %v1264 = vrot.slane %v1260, 4
  %v1266 = vsel %vm110, %v1262, 0
  %v1268 = vsel %vm114, %v1264, 0
  %1270 = vmatpush.msra.mxu0 0.0
  %1271 = vmatpush.msra.mxu0 0.0
  %1272 = vmatpush.msra.mxu0 0.0
  %1273 = vmatpush.msra.mxu0 0.0
  %1274 = vmatpush.msra.mxu0 0.0
  %1275 = vmatpush.msra.mxu0 0.0
  %1276 = vmatpush.msra.mxu0 0.0
  %1277 = vmatpush.msra.mxu0 0.0
  %1278 = vmatpush.msra.mxu0 0.0
  %1279 = vmatpush.msra.mxu0 0.0
  %1280 = vmatpush.msra.mxu0 0.0
  %1281 = vmatpush.msra.mxu0 0.0
  %1282 = vmatpush.msra.mxu0 0.0
  %1283 = vmatpush.msra.mxu0 0.0
  %1284 = vmatpush.msra.mxu0 0.0
  %1285 = vmatpush.msra.mxu0 %v1268
  %1286 = vmatmul.f32.gmra.mxu0 %v1266
  %v1287 = vpop.f32.mrf.mxu0
  %v1288 = vadd.f32 0.0, %v1287
  %1289 = vdwg.mxu0
  %v1291 = vsel %vm110, %v1261, 0
  %v1294 = vsel %vm114, %v1236, 0
  %1296 = vmatpush.msra.mxu0 0.0
  %1297 = vmatpush.msra.mxu0 0.0
  %1298 = vmatpush.msra.mxu0 0.0
  %1299 = vmatpush.msra.mxu0 0.0
  %1300 = vmatpush.msra.mxu0 0.0
  %1301 = vmatpush.msra.mxu0 0.0
  %1302 = vmatpush.msra.mxu0 0.0
  %1303 = vmatpush.msra.mxu0 0.0
  %1304 = vmatpush.msra.mxu0 0.0
  %1305 = vmatpush.msra.mxu0 0.0
  %1306 = vmatpush.msra.mxu0 0.0
  %1307 = vmatpush.msra.mxu0 0.0
  %1308 = vmatpush.msra.mxu0 0.0
  %1309 = vmatpush.msra.mxu0 0.0
  %1310 = vmatpush.msra.mxu0 0.0
  %1311 = vmatpush.msra.mxu0 %v1294
  %1312 = vmatmul.f32.gmra.mxu0 %v1291
  %v1313 = vpop.f32.mrf.mxu0
  %v1314 = vadd.f32 %v1288, %v1313
  %1315 = vdwg.mxu0
  %v1316 = vld [vmem:[%s14] sm:$0xff]
  %1318 = vset.pattern.permute.xlu0 0
  %1319 = vperm.xlu0 %1318, %v1316
  %v1320 = vpop.permute.xlu0 %1319
  %v1322 = vadd.f32 %v1314, %v1320
  %v1323 = vadd.f32 %v76, %v1322
  %v1324 = vmul.f32 %v1323, 0.70710677
  %vm1325 = vcmask 519168
  %1326 = vst.msk [vmem:[%s23] sm:$0xf] %vm1325, %v1324
  %vm1327 = vcmask 523268
  %1328 = vst.msk [vmem:[%s24 - $0x4] sm:$0xf0] %vm1327, %v1322
  // Predicated region
  $region94: #{residual_block_forward.1} parent=0 // pred_check
    _
  $region95: #{residual_block_forward.1} parent=0 // pred_check_branch
    %1330 = sbr.rel (0) target = $region97
  $region96: #{residual_block_forward.1} parent=0 // pred_region
    _
  $region97: #{residual_block_forward.1} parent=0 // pred_fallthru
    _
  // Predicated region
  $region98: #{residual_block_forward.1} parent=0 // pred_check
    _
  $region99: #{residual_block_forward.1} parent=0 // pred_check_branch
    %1332 = sbr.rel (0) target = $region101
  $region100: #{residual_block_forward.1} parent=0 // pred_region
    _
  $region101: #{residual_block_forward.1} parent=0 // pred_fallthru
    _
  // Predicated region
  $region102: #{residual_block_forward.1} parent=0 // pred_check
    _
  $region103: #{residual_block_forward.1} parent=0 // pred_check_branch
    %1334 = sbr.rel (0) target = $region105
  $region104: #{residual_block_forward.1} parent=0 // pred_region
    _
  $region105: #{residual_block_forward.1} parent=0 // pred_fallthru
    _
  // Predicated region
  $region106: #{residual_block_forward.1} parent=0 // pred_check
    _
  $region107: #{residual_block_forward.1} parent=0 // pred_check_branch
    %1336 = sbr.rel (0) target = $region109
  $region108: #{residual_block_forward.1} parent=0 // pred_region
    _
  $region109: #{residual_block_forward.1} parent=0 // pred_fallthru
    _

</llo_original>
